<compile_context>
chip_gen: v7x
topology: tpu7x:2x2x1
jax: 0.10.0
libtpu: 0.0.40
codegen_flags: <defaults>
</compile_context>

<pallas_src>
import functools
import math

import jax
import jax.numpy as jnp
from jax.experimental import pallas as pl
from jax.experimental.pallas import tpu as pltpu


def cross_attention_kernel(
    tgt_ref, mem_ref,
    wq_ref, wkv_ref, wo_ref, w1_ref, w2_ref,
    bd_ref, bkv_ref, b1_ref,
    maskq_ref,
    out_ref,
    *, nhead, eps,
):
    Bblk, Lq, D = tgt_ref.shape
    Lk = mem_ref.shape[1]
    hd = D // nhead
    scale = 1.0 / math.sqrt(hd)
    cdt = tgt_ref.dtype  # MXU operand dtype: bf16 inputs stay bf16, f32 stays f32

    def mxu(a, b):
        return jnp.dot(a.astype(cdt), b.astype(cdt),
                       preferred_element_type=jnp.float32)

    def mxu_nt(a, b):
        # a @ b.T without an XLU transpose: contract last dim of both operands.
        return jax.lax.dot_general(
            a.astype(cdt), b.astype(cdt),
            dimension_numbers=(((1,), (1,)), ((), ())),
            preferred_element_type=jnp.float32)

    # ---- load the batch block: leading-dim reshape is layout-preserving (Lq, Lk
    # are multiples of 8), so no VMEM copies (unlike slice + concatenate). ----
    tgt = tgt_ref[...].reshape(Bblk * Lq, D)
    mem = mem_ref[...].reshape(Bblk * Lk, D)

    bq = bd_ref[0:1, :]
    bo = bd_ref[1:2, :]
    b2 = bd_ref[2:3, :]

    # ---- fused projections: Q and (K|V) ----
    q = mxu(tgt, wq_ref[...]) + bq                    # (Bblk*Lq, D)   f32
    kv = mxu(mem, wkv_ref[...]) + bkv_ref[...]        # (Bblk*Lk, 2D)  f32
    k = kv[:, :D]
    v = kv[:, D:]

    # (H*Lq, D): row h*Lq+i keeps only head h's columns.
    mask_q = maskq_ref[...]

    # ---- multi-head attention, "replicate Q along sublanes" layout ----
    attn_rows = []
    for b in range(Bblk):       # static, small (attention cannot mix batch elements)
        qb = q[b * Lq:(b + 1) * Lq, :]                # (Lq, D)
        kb = k[b * Lk:(b + 1) * Lk, :]                # (Lk, D)
        vb = v[b * Lk:(b + 1) * Lk, :]                # (Lk, D)

        # Row h*Lq+i of q_big is q_i restricted to head h's columns, so a single
        # NT contraction against the full K gives per-head scores with no mask_k
        # constant and no K transpose.
        q_big = jnp.concatenate([qb] * nhead, axis=0) * mask_q       # (H*Lq, D)
        s = mxu_nt(q_big, kb) * scale                                # (H*Lq, Lk) f32

        # Row-wise softmax over keys == per-(head, query) softmax: exact per-head
        # max (no cross-head underflow) and per-head denominator via a cheap
        # lane reduction (no (H*Lk, H*Lk) seg_sum matmul). Denominator >= 1 after
        # the max subtraction, so the approximate EUP reciprocal is well-conditioned.
        s = s - jnp.max(s, axis=-1, keepdims=True)
        p = jnp.exp(s)
        p = p * pl.reciprocal(jnp.sum(p, axis=-1, keepdims=True), approx=True)

        pv = mxu(p, vb) * mask_q                                     # (H*Lq, D)
        # Collapse the per-head row blocks back into the packed (Lq, D) layout:
        # tiny static loop of aligned sublane slices + adds.
        ob = pv[0:Lq, :]
        for h in range(1, nhead):
            ob = ob + pv[h * Lq:(h + 1) * Lq, :]
        attn_rows.append(ob)                                         # (Lq, D) f32

    attn = attn_rows[0] if Bblk == 1 else jnp.concatenate(attn_rows, axis=0)

    # ---- out_proj + residual + LayerNorm (norm2, no affine); dropout2 = identity ----
    attn = mxu(attn, wo_ref[...]) + bo
    x = tgt.astype(jnp.float32) + attn
    mu = jnp.mean(x, axis=-1, keepdims=True)
    var = jnp.mean(jnp.square(x - mu), axis=-1, keepdims=True)
    x = (x - mu) * jax.lax.rsqrt(var + eps)

    # ---- FFN: linear1 -> relu -> linear2 (dropout = identity) + residual ----
    h1 = jnp.maximum(mxu(x, w1_ref[...]) + b1_ref[...], 0.0)
    y = mxu(h1, w2_ref[...]) + b2
    out = x + y

    # Layout-preserving split of the sublane dim; single full-block store.
    out_ref[...] = out.reshape(Bblk, Lq, D).astype(out_ref.dtype)


def _num_tensorcores():
    """Best-effort TensorCore count per chip (v7x has 2)."""
    try:
        kind = jax.devices()[0].device_kind.lower().replace(" ", "")
    except Exception:
        return 1
    return 2 if ("v7" in kind or "tpu7" in kind) else 1


def cross_attention(tgt, memory, params, nhead, *, block_b=None, eps=1e-5):
    """All weight matrices are stored pre-transposed for right-multiplication (x @ W)."""
    B, Lq, D = tgt.shape
    Bm, Lk, Dm = memory.shape
    assert Bm == B and Dm == D, "tgt / memory shape mismatch"
    assert D % nhead == 0, "d_model must be divisible by nhead"
    dff = params["w1"].shape[1]
    hd = D // nhead
    dtype = tgt.dtype

    if block_b is None:
        # Batch up to 8 rows per grid step (amortize the ~0.35 us per-step overhead)
        # but keep grid length >= #TensorCores so the "parallel" batch axis gives
        # v7x's second core work.
        n_tc = _num_tensorcores()
        cap = min(8, B)
        if n_tc > 1 and B >= n_tc:
            cap = min(cap, max(1, B // n_tc))
        block_b = max(d for d in range(1, cap + 1) if B % d == 0)
    assert B % block_b == 0

    # Cast weights/biases/masks to the activation dtype host-side: with bf16
    # activations this halves resident weight VMEM and DMA bytes (MXU still
    # accumulates in f32 inside the kernel via preferred_element_type).
    cast = lambda name: params[name].astype(dtype)
    wq, wo, w1, w2, b1 = cast("wq"), cast("wo"), cast("w1"), cast("w2"), cast("b1")
    wkv = jnp.concatenate([cast("wk"), cast("wv")], axis=1)               # (D, 2D)
    bkv = jnp.concatenate([cast("bk"), cast("bv")], axis=1)               # (1, 2D)
    b_d = jnp.concatenate([cast("bq"), cast("bo"), cast("b2")], axis=0)   # (3, D)

    # Head mask in the (heads x queries, d_model) layout: row h*Lq+i keeps only
    # head h's columns. Built host-side; its block index never changes, so it is
    # DMA'd once and stays resident across the grid.
    col_head = jnp.arange(D) // hd                                        # (D,)
    row_head = jnp.arange(nhead * Lq) // Lq                               # (H*Lq,)
    mask_q = (row_head[:, None] == col_head[None, :]).astype(dtype)       # (H*Lq, D)

    kernel = functools.partial(cross_attention_kernel, nhead=nhead, eps=eps)
    const = lambda shape: pl.BlockSpec(shape, lambda b: (0, 0))
    # TODO(synk): on v7x (64 MiB VMEM) single-buffer the resident constants
    # (pipeline_mode=pl.Buffered(1)) and raise vmem_limit_bytes once d_model/dff are
    # realistic; at head_dim >= 64 or long Lk, switch the attention stage to a
    # head-batched flash-style (online-softmax) loop instead of the replicate+mask trick.

    operands = (tgt, memory, wq, wkv, wo, w1, w2, b_d, bkv, b1, mask_q)
    bytes_accessed = int(sum(int(a.size) * a.dtype.itemsize for a in operands)
                         + B * Lq * D * jnp.dtype(dtype).itemsize)
    flops = 2 * B * (Lq * D * D          # Q projection
                     + Lk * D * 2 * D    # fused K|V projection
                     + 2 * Lq * Lk * D   # scores + P@V (logical)
                     + Lq * D * D        # out projection
                     + 2 * Lq * D * dff) # FFN
    cost = pl.CostEstimate(flops=int(flops),
                           transcendentals=int(B * nhead * Lq * Lk),
                           bytes_accessed=bytes_accessed)

    return pl.pallas_call(
        kernel,
        out_shape=jax.ShapeDtypeStruct((B, Lq, D), dtype),
        grid=(B // block_b,),
        in_specs=[
            pl.BlockSpec((block_b, Lq, D), lambda b: (b, 0, 0)),   # tgt
            pl.BlockSpec((block_b, Lk, D), lambda b: (b, 0, 0)),   # memory
            const((D, D)),           # wq   (transposed)
            const((D, 2 * D)),       # wk|wv fused (transposed)
            const((D, D)),           # wo   (transposed)
            const((D, dff)),         # w1   (transposed)
            const((dff, D)),         # w2   (transposed)
            const((3, D)),           # packed biases: bq / bo / b2
            const((1, 2 * D)),       # bk|bv fused
            const((1, dff)),         # b1
            const((nhead * Lq, D)),  # per-head column mask
        ],
        out_specs=pl.BlockSpec((block_b, Lq, D), lambda b: (b, 0, 0)),
        compiler_params=pltpu.CompilerParams(
            dimension_semantics=("parallel",),     # batch axis -> v7x megacore split
            vmem_limit_bytes=32 * 1024 * 1024),
        cost_estimate=cost,
    )(*operands)


def reference(tgt, memory, p, nhead, eps=1e-5):
    """Pure-JAX reference mirroring nn.MultiheadAttention + the module forward (eval)."""
    B, Lq, D = tgt.shape
    Lk = memory.shape[1]
    hd = D // nhead
    scale = 1.0 / math.sqrt(hd)

    q = tgt @ p["wq"] + p["bq"]
    k = memory @ p["wk"] + p["bk"]
    v = memory @ p["wv"] + p["bv"]
    q = q.reshape(B, Lq, nhead, hd).transpose(0, 2, 1, 3)
    k = k.reshape(B, Lk, nhead, hd).transpose(0, 2, 1, 3)
    v = v.reshape(B, Lk, nhead, hd).transpose(0, 2, 1, 3)
    scores = jnp.einsum("bhqd,bhkd->bhqk", q, k) * scale
    attn = jax.nn.softmax(scores, axis=-1)
    o = jnp.einsum("bhqk,bhkd->bhqd", attn, v)
    o = o.transpose(0, 2, 1, 3).reshape(B, Lq, D)
    o = o @ p["wo"] + p["bo"]

    x = tgt + o
    mu = jnp.mean(x, axis=-1, keepdims=True)
    var = jnp.mean((x - mu) ** 2, axis=-1, keepdims=True)
    x = (x - mu) / jnp.sqrt(var + eps)

    y = jnp.maximum(x @ p["w1"] + p["b1"], 0.0) @ p["w2"] + p["b2"]
    return x + y


if __name__ == "__main__":
    # Small shapes consistent with the module: d_model=32, nhead=4, dim_feedforward=64.
    B, Lq, Lk = 2, 8, 8
    d_model, nhead, dff = 32, 4, 64

    key = jax.random.PRNGKey(0)
    ks = jax.random.split(key, 16)

    def init(k, shape, scale=0.05):
        return jax.random.normal(k, shape, dtype=jnp.float32) * scale

    # Parameters (stored already transposed for right-multiplication x @ W).
    params = {
        "wq": init(ks[0], (d_model, d_model)),
        "wk": init(ks[1], (d_model, d_model)),
        "wv": init(ks[2], (d_model, d_model)),
        "bq": init(ks[3], (1, d_model)),
        "bk": init(ks[4], (1, d_model)),
        "bv": init(ks[5], (1, d_model)),
        "wo": init(ks[6], (d_model, d_model)),
        "bo": init(ks[7], (1, d_model)),
        "w1": init(ks[8], (d_model, dff)),
        "b1": init(ks[9], (1, dff)),
        "w2": init(ks[10], (dff, d_model)),
        "b2": init(ks[11], (1, d_model)),
    }

    tgt = jax.random.normal(ks[12], (B, Lq, d_model), dtype=jnp.float32)
    memory = jax.random.normal(ks[13], (B, Lk, d_model), dtype=jnp.float32)

    out = cross_attention(tgt, memory, params, nhead)
    out = jax.block_until_ready(out)

    ref = reference(tgt, memory, params, nhead)
    assert out.shape == (B, Lq, d_model)
    # Tolerance covers the EUP approximate reciprocal used for the softmax denominator.
    assert jnp.allclose(out, ref, atol=5e-3, rtol=5e-3), "mismatch vs reference"

    # TODO(synk): dropout layers are identity (inference mode); training-mode stochastic
    # dropout would need pltpu.prng_seed / prng_random_bits inside the kernel.
    print("KERNEL_OK")
</pallas_src>

<mosaic_0001>
module attributes {stable_mosaic.version = 11 : i64} {
  func.func @cross_attention_kernel(%arg0: i32, %arg1: memref<2x8x32xf32, #tpu.memory_space<vmem>>, %arg2: memref<2x8x32xf32, #tpu.memory_space<vmem>>, %arg3: memref<32x32xf32, #tpu.memory_space<vmem>>, %arg4: memref<32x64xf32, #tpu.memory_space<vmem>>, %arg5: memref<32x32xf32, #tpu.memory_space<vmem>>, %arg6: memref<32x64xf32, #tpu.memory_space<vmem>>, %arg7: memref<64x32xf32, #tpu.memory_space<vmem>>, %arg8: memref<3x32xf32, #tpu.memory_space<vmem>>, %arg9: memref<1x64xf32, #tpu.memory_space<vmem>>, %arg10: memref<1x64xf32, #tpu.memory_space<vmem>>, %arg11: memref<32x32xf32, #tpu.memory_space<vmem>>, %arg12: memref<2x8x32xf32, #tpu.memory_space<vmem>>) attributes {dimension_semantics = [#tpu.dimension_semantics<parallel>], iteration_bounds = array<i64: 1>, scalar_prefetch = 0 : i64, scratch_operands = 0 : i64, tpu.core_type = #tpu.core_type<tc>, window_params = [{transform_indices = @transform_0, window_bounds = array<i64: 2, 8, 32>}, {transform_indices = @transform_1, window_bounds = array<i64: 2, 8, 32>}, {pipeline_mode = #tpu.pipeline_mode<synchronous>, transform_indices = @transform_2, window_bounds = array<i64: 32, 32>}, {pipeline_mode = #tpu.pipeline_mode<synchronous>, transform_indices = @transform_3, window_bounds = array<i64: 32, 64>}, {pipeline_mode = #tpu.pipeline_mode<synchronous>, transform_indices = @transform_4, window_bounds = array<i64: 32, 32>}, {pipeline_mode = #tpu.pipeline_mode<synchronous>, transform_indices = @transform_5, window_bounds = array<i64: 32, 64>}, {pipeline_mode = #tpu.pipeline_mode<synchronous>, transform_indices = @transform_6, window_bounds = array<i64: 64, 32>}, {pipeline_mode = #tpu.pipeline_mode<synchronous>, transform_indices = @transform_7, window_bounds = array<i64: 3, 32>}, {pipeline_mode = #tpu.pipeline_mode<synchronous>, transform_indices = @transform_8, window_bounds = array<i64: 1, 64>}, {pipeline_mode = #tpu.pipeline_mode<synchronous>, transform_indices = @transform_9, window_bounds = array<i64: 1, 64>}, {pipeline_mode = #tpu.pipeline_mode<synchronous>, transform_indices = @transform_10, window_bounds = array<i64: 32, 32>}, {transform_indices = @transform_11, window_bounds = array<i64: 2, 8, 32>}]} {
    %c0 = arith.constant 0 : index
    %c0_0 = arith.constant 0 : index
    %c0_1 = arith.constant 0 : index
    %0 = vector.load %arg1[%c0, %c0_0, %c0_1] : memref<2x8x32xf32, #tpu.memory_space<vmem>>, vector<2x8x32xf32>
    %1 = vector.shape_cast %0 : vector<2x8x32xf32> to vector<16x32xf32>
    %c0_2 = arith.constant 0 : index
    %c0_3 = arith.constant 0 : index
    %c0_4 = arith.constant 0 : index
    %2 = vector.load %arg2[%c0_2, %c0_3, %c0_4] : memref<2x8x32xf32, #tpu.memory_space<vmem>>, vector<2x8x32xf32>
    %3 = vector.shape_cast %2 : vector<2x8x32xf32> to vector<16x32xf32>
    %c0_5 = arith.constant 0 : index
    %c0_6 = arith.constant 0 : index
    %4 = vector.load %arg8[%c0_5, %c0_6] : memref<3x32xf32, #tpu.memory_space<vmem>>, vector<1x32xf32>
    %c1 = arith.constant 1 : index
    %c0_7 = arith.constant 0 : index
    %5 = vector.load %arg8[%c1, %c0_7] : memref<3x32xf32, #tpu.memory_space<vmem>>, vector<1x32xf32>
    %c2 = arith.constant 2 : index
    %c0_8 = arith.constant 0 : index
    %6 = vector.load %arg8[%c2, %c0_8] : memref<3x32xf32, #tpu.memory_space<vmem>>, vector<1x32xf32>
    %c0_9 = arith.constant 0 : index
    %c0_10 = arith.constant 0 : index
    %7 = vector.load %arg3[%c0_9, %c0_10] : memref<32x32xf32, #tpu.memory_space<vmem>>, vector<32x32xf32>
    %cst = arith.constant dense<0.000000e+00> : vector<16x32xf32>
    %8 = tpu.matmul %1, %7, %cst {dimension_numbers = #tpu.dot_dimension_numbers<[1], [0], [0], [1], [0, 0, 1, 1], [], []>} : vector<16x32xf32>, vector<32x32xf32>, vector<16x32xf32> -> vector<16x32xf32>
    %9 = vector.broadcast %4 : vector<1x32xf32> to vector<16x32xf32>
    %10 = arith.addf %8, %9 : vector<16x32xf32>
    %c0_11 = arith.constant 0 : index
    %c0_12 = arith.constant 0 : index
    %11 = vector.load %arg4[%c0_11, %c0_12] : memref<32x64xf32, #tpu.memory_space<vmem>>, vector<32x64xf32>
    %cst_13 = arith.constant dense<0.000000e+00> : vector<16x64xf32>
    %12 = tpu.matmul %3, %11, %cst_13 {dimension_numbers = #tpu.dot_dimension_numbers<[1], [0], [0], [1], [0, 0, 1, 1], [], []>} : vector<16x32xf32>, vector<32x64xf32>, vector<16x64xf32> -> vector<16x64xf32>
    %c0_14 = arith.constant 0 : index
    %c0_15 = arith.constant 0 : index
    %13 = vector.load %arg9[%c0_14, %c0_15] : memref<1x64xf32, #tpu.memory_space<vmem>>, vector<1x64xf32>
    %14 = vector.broadcast %13 : vector<1x64xf32> to vector<16x64xf32>
    %15 = arith.addf %12, %14 : vector<16x64xf32>
    %16 = vector.extract_strided_slice %15 {offsets = [0, 0], sizes = [16, 32], strides = [1, 1]} : vector<16x64xf32> to vector<16x32xf32>
    %17 = vector.extract_strided_slice %15 {offsets = [0, 32], sizes = [16, 32], strides = [1, 1]} : vector<16x64xf32> to vector<16x32xf32>
    %c0_16 = arith.constant 0 : index
    %c0_17 = arith.constant 0 : index
    %18 = vector.load %arg11[%c0_16, %c0_17] : memref<32x32xf32, #tpu.memory_space<vmem>>, vector<32x32xf32>
    %19 = vector.extract_strided_slice %10 {offsets = [0, 0], sizes = [8, 32], strides = [1, 1]} : vector<16x32xf32> to vector<8x32xf32>
    %20 = vector.extract_strided_slice %16 {offsets = [0, 0], sizes = [8, 32], strides = [1, 1]} : vector<16x32xf32> to vector<8x32xf32>
    %21 = vector.extract_strided_slice %17 {offsets = [0, 0], sizes = [8, 32], strides = [1, 1]} : vector<16x32xf32> to vector<8x32xf32>
    %22 = tpu.concatenate %19, %19, %19, %19 in 0 : vector<8x32xf32>, vector<8x32xf32>, vector<8x32xf32>, vector<8x32xf32> -> vector<32x32xf32>
    %23 = arith.mulf %22, %18 : vector<32x32xf32>
    %cst_18 = arith.constant dense<0.000000e+00> : vector<32x8xf32>
    %24 = tpu.matmul %23, %20, %cst_18 {dimension_numbers = #tpu.dot_dimension_numbers<[1], [1], [0], [0], [0, 0, 1, 0], [], []>} : vector<32x32xf32>, vector<8x32xf32>, vector<32x8xf32> -> vector<32x8xf32>
    %cst_19 = arith.constant 0.353553385 : f32
    %25 = vector.broadcast %cst_19 : f32 to vector<32x8xf32>
    %26 = arith.mulf %24, %25 : vector<32x8xf32>
    %cst_20 = arith.constant dense<0xFF800000> : vector<32xf32>
    %27 = vector.multi_reduction <maximumf>, %26, %cst_20 [1] : vector<32x8xf32> to vector<32xf32>
    %28 = vector.shape_cast %27 : vector<32xf32> to vector<32x1xf32>
    %29 = vector.broadcast %28 : vector<32x1xf32> to vector<32x8xf32>
    %30 = arith.subf %26, %29 : vector<32x8xf32>
    %31 = math.exp %30 : vector<32x8xf32>
    %cst_21 = arith.constant dense<0.000000e+00> : vector<32xf32>
    %32 = vector.multi_reduction <add>, %31, %cst_21 [1] : vector<32x8xf32> to vector<32xf32>
    %33 = vector.shape_cast %32 : vector<32xf32> to vector<32x1xf32>
    %34 = tpu.reciprocal %33 {approx = true} : vector<32x1xf32> -> vector<32x1xf32>
    %35 = vector.broadcast %34 : vector<32x1xf32> to vector<32x8xf32>
    %36 = arith.mulf %31, %35 : vector<32x8xf32>
    %cst_22 = arith.constant dense<0.000000e+00> : vector<32x32xf32>
    %37 = tpu.matmul %36, %21, %cst_22 {dimension_numbers = #tpu.dot_dimension_numbers<[1], [0], [0], [1], [0, 0, 1, 1], [], []>} : vector<32x8xf32>, vector<8x32xf32>, vector<32x32xf32> -> vector<32x32xf32>
    %38 = arith.mulf %37, %18 : vector<32x32xf32>
    %39 = vector.extract_strided_slice %38 {offsets = [0, 0], sizes = [8, 32], strides = [1, 1]} : vector<32x32xf32> to vector<8x32xf32>
    %40 = vector.extract_strided_slice %38 {offsets = [8, 0], sizes = [8, 32], strides = [1, 1]} : vector<32x32xf32> to vector<8x32xf32>
    %41 = arith.addf %39, %40 : vector<8x32xf32>
    %42 = vector.extract_strided_slice %38 {offsets = [16, 0], sizes = [8, 32], strides = [1, 1]} : vector<32x32xf32> to vector<8x32xf32>
    %43 = arith.addf %41, %42 : vector<8x32xf32>
    %44 = vector.extract_strided_slice %38 {offsets = [24, 0], sizes = [8, 32], strides = [1, 1]} : vector<32x32xf32> to vector<8x32xf32>
    %45 = arith.addf %43, %44 : vector<8x32xf32>
    %46 = vector.extract_strided_slice %10 {offsets = [8, 0], sizes = [8, 32], strides = [1, 1]} : vector<16x32xf32> to vector<8x32xf32>
    %47 = vector.extract_strided_slice %16 {offsets = [8, 0], sizes = [8, 32], strides = [1, 1]} : vector<16x32xf32> to vector<8x32xf32>
    %48 = vector.extract_strided_slice %17 {offsets = [8, 0], sizes = [8, 32], strides = [1, 1]} : vector<16x32xf32> to vector<8x32xf32>
    %49 = tpu.concatenate %46, %46, %46, %46 in 0 : vector<8x32xf32>, vector<8x32xf32>, vector<8x32xf32>, vector<8x32xf32> -> vector<32x32xf32>
    %50 = arith.mulf %49, %18 : vector<32x32xf32>
    %cst_23 = arith.constant dense<0.000000e+00> : vector<32x8xf32>
    %51 = tpu.matmul %50, %47, %cst_23 {dimension_numbers = #tpu.dot_dimension_numbers<[1], [1], [0], [0], [0, 0, 1, 0], [], []>} : vector<32x32xf32>, vector<8x32xf32>, vector<32x8xf32> -> vector<32x8xf32>
    %cst_24 = arith.constant 0.353553385 : f32
    %52 = vector.broadcast %cst_24 : f32 to vector<32x8xf32>
    %53 = arith.mulf %51, %52 : vector<32x8xf32>
    %cst_25 = arith.constant dense<0xFF800000> : vector<32xf32>
    %54 = vector.multi_reduction <maximumf>, %53, %cst_25 [1] : vector<32x8xf32> to vector<32xf32>
    %55 = vector.shape_cast %54 : vector<32xf32> to vector<32x1xf32>
    %56 = vector.broadcast %55 : vector<32x1xf32> to vector<32x8xf32>
    %57 = arith.subf %53, %56 : vector<32x8xf32>
    %58 = math.exp %57 : vector<32x8xf32>
    %cst_26 = arith.constant dense<0.000000e+00> : vector<32xf32>
    %59 = vector.multi_reduction <add>, %58, %cst_26 [1] : vector<32x8xf32> to vector<32xf32>
    %60 = vector.shape_cast %59 : vector<32xf32> to vector<32x1xf32>
    %61 = tpu.reciprocal %60 {approx = true} : vector<32x1xf32> -> vector<32x1xf32>
    %62 = vector.broadcast %61 : vector<32x1xf32> to vector<32x8xf32>
    %63 = arith.mulf %58, %62 : vector<32x8xf32>
    %cst_27 = arith.constant dense<0.000000e+00> : vector<32x32xf32>
    %64 = tpu.matmul %63, %48, %cst_27 {dimension_numbers = #tpu.dot_dimension_numbers<[1], [0], [0], [1], [0, 0, 1, 1], [], []>} : vector<32x8xf32>, vector<8x32xf32>, vector<32x32xf32> -> vector<32x32xf32>
    %65 = arith.mulf %64, %18 : vector<32x32xf32>
    %66 = vector.extract_strided_slice %65 {offsets = [0, 0], sizes = [8, 32], strides = [1, 1]} : vector<32x32xf32> to vector<8x32xf32>
    %67 = vector.extract_strided_slice %65 {offsets = [8, 0], sizes = [8, 32], strides = [1, 1]} : vector<32x32xf32> to vector<8x32xf32>
    %68 = arith.addf %66, %67 : vector<8x32xf32>
    %69 = vector.extract_strided_slice %65 {offsets = [16, 0], sizes = [8, 32], strides = [1, 1]} : vector<32x32xf32> to vector<8x32xf32>
    %70 = arith.addf %68, %69 : vector<8x32xf32>
    %71 = vector.extract_strided_slice %65 {offsets = [24, 0], sizes = [8, 32], strides = [1, 1]} : vector<32x32xf32> to vector<8x32xf32>
    %72 = arith.addf %70, %71 : vector<8x32xf32>
    %73 = tpu.concatenate %45, %72 in 0 : vector<8x32xf32>, vector<8x32xf32> -> vector<16x32xf32>
    %c0_28 = arith.constant 0 : index
    %c0_29 = arith.constant 0 : index
    %74 = vector.load %arg5[%c0_28, %c0_29] : memref<32x32xf32, #tpu.memory_space<vmem>>, vector<32x32xf32>
    %cst_30 = arith.constant dense<0.000000e+00> : vector<16x32xf32>
    %75 = tpu.matmul %73, %74, %cst_30 {dimension_numbers = #tpu.dot_dimension_numbers<[1], [0], [0], [1], [0, 0, 1, 1], [], []>} : vector<16x32xf32>, vector<32x32xf32>, vector<16x32xf32> -> vector<16x32xf32>
    %76 = vector.broadcast %5 : vector<1x32xf32> to vector<16x32xf32>
    %77 = arith.addf %75, %76 : vector<16x32xf32>
    %78 = arith.addf %1, %77 : vector<16x32xf32>
    %cst_31 = arith.constant dense<0.000000e+00> : vector<16xf32>
    %79 = vector.multi_reduction <add>, %78, %cst_31 [1] : vector<16x32xf32> to vector<16xf32>
    %80 = vector.shape_cast %79 : vector<16xf32> to vector<16x1xf32>
    %cst_32 = arith.constant 3.200000e+01 : f32
    %81 = vector.broadcast %cst_32 : f32 to vector<16x1xf32>
    %82 = arith.divf %80, %81 : vector<16x1xf32>
    %83 = vector.broadcast %82 : vector<16x1xf32> to vector<16x32xf32>
    %84 = arith.subf %78, %83 : vector<16x32xf32>
    %85 = arith.mulf %84, %84 : vector<16x32xf32>
    %cst_33 = arith.constant dense<0.000000e+00> : vector<16xf32>
    %86 = vector.multi_reduction <add>, %85, %cst_33 [1] : vector<16x32xf32> to vector<16xf32>
    %87 = vector.shape_cast %86 : vector<16xf32> to vector<16x1xf32>
    %cst_34 = arith.constant 3.200000e+01 : f32
    %88 = vector.broadcast %cst_34 : f32 to vector<16x1xf32>
    %89 = arith.divf %87, %88 : vector<16x1xf32>
    %90 = vector.broadcast %82 : vector<16x1xf32> to vector<16x32xf32>
    %91 = arith.subf %78, %90 : vector<16x32xf32>
    %cst_35 = arith.constant 9.99999974E-6 : f32
    %92 = vector.broadcast %cst_35 : f32 to vector<16x1xf32>
    %93 = arith.addf %89, %92 : vector<16x1xf32>
    %94 = math.rsqrt %93 : vector<16x1xf32>
    %95 = vector.broadcast %94 : vector<16x1xf32> to vector<16x32xf32>
    %96 = arith.mulf %91, %95 : vector<16x32xf32>
    %c0_36 = arith.constant 0 : index
    %c0_37 = arith.constant 0 : index
    %97 = vector.load %arg6[%c0_36, %c0_37] : memref<32x64xf32, #tpu.memory_space<vmem>>, vector<32x64xf32>
    %cst_38 = arith.constant dense<0.000000e+00> : vector<16x64xf32>
    %98 = tpu.matmul %96, %97, %cst_38 {dimension_numbers = #tpu.dot_dimension_numbers<[1], [0], [0], [1], [0, 0, 1, 1], [], []>} : vector<16x32xf32>, vector<32x64xf32>, vector<16x64xf32> -> vector<16x64xf32>
    %c0_39 = arith.constant 0 : index
    %c0_40 = arith.constant 0 : index
    %99 = vector.load %arg10[%c0_39, %c0_40] : memref<1x64xf32, #tpu.memory_space<vmem>>, vector<1x64xf32>
    %100 = vector.broadcast %99 : vector<1x64xf32> to vector<16x64xf32>
    %101 = arith.addf %98, %100 : vector<16x64xf32>
    %cst_41 = arith.constant 0.000000e+00 : f32
    %102 = vector.broadcast %cst_41 : f32 to vector<16x64xf32>
    %103 = arith.maximumf %101, %102 : vector<16x64xf32>
    %c0_42 = arith.constant 0 : index
    %c0_43 = arith.constant 0 : index
    %104 = vector.load %arg7[%c0_42, %c0_43] : memref<64x32xf32, #tpu.memory_space<vmem>>, vector<64x32xf32>
    %cst_44 = arith.constant dense<0.000000e+00> : vector<16x32xf32>
    %105 = tpu.matmul %103, %104, %cst_44 {dimension_numbers = #tpu.dot_dimension_numbers<[1], [0], [0], [1], [0, 0, 1, 1], [], []>} : vector<16x64xf32>, vector<64x32xf32>, vector<16x32xf32> -> vector<16x32xf32>
    %106 = vector.broadcast %6 : vector<1x32xf32> to vector<16x32xf32>
    %107 = arith.addf %105, %106 : vector<16x32xf32>
    %108 = arith.addf %96, %107 : vector<16x32xf32>
    %109 = vector.shape_cast %108 : vector<16x32xf32> to vector<2x8x32xf32>
    %c0_45 = arith.constant 0 : index
    %c0_46 = arith.constant 0 : index
    %c0_47 = arith.constant 0 : index
    %110 = vector.load %arg12[%c0_45, %c0_46, %c0_47] : memref<2x8x32xf32, #tpu.memory_space<vmem>>, vector<2x8x32xf32>
    tpu.vector_store %arg12[%c0_45, %c0_46, %c0_47], %109 {strides = array<i32>} : memref<2x8x32xf32, #tpu.memory_space<vmem>>, vector<2x8x32xf32>,
    return
  }
  func.func @transform_0(%arg0: i32) -> (i32, i32, i32) {
    %c0_i32 = arith.constant 0 : i32
    %c0_i32_0 = arith.constant 0 : i32
    %c0_i32_1 = arith.constant 0 : i32
    return %arg0, %c0_i32, %c0_i32_0 : i32, i32, i32
  }
  func.func @transform_1(%arg0: i32) -> (i32, i32, i32) {
    %c0_i32 = arith.constant 0 : i32
    %c0_i32_0 = arith.constant 0 : i32
    %c0_i32_1 = arith.constant 0 : i32
    return %arg0, %c0_i32, %c0_i32_0 : i32, i32, i32
  }
  func.func @transform_2(%arg0: i32) -> (i32, i32) {
    %c0_i32 = arith.constant 0 : i32
    %c0_i32_0 = arith.constant 0 : i32
    %c0_i32_1 = arith.constant 0 : i32
    return %c0_i32, %c0_i32_0 : i32, i32
  }
  func.func @transform_3(%arg0: i32) -> (i32, i32) {
    %c0_i32 = arith.constant 0 : i32
    %c0_i32_0 = arith.constant 0 : i32
    %c0_i32_1 = arith.constant 0 : i32
    return %c0_i32, %c0_i32_0 : i32, i32
  }
  func.func @transform_4(%arg0: i32) -> (i32, i32) {
    %c0_i32 = arith.constant 0 : i32
    %c0_i32_0 = arith.constant 0 : i32
    %c0_i32_1 = arith.constant 0 : i32
    return %c0_i32, %c0_i32_0 : i32, i32
  }
  func.func @transform_5(%arg0: i32) -> (i32, i32) {
    %c0_i32 = arith.constant 0 : i32
    %c0_i32_0 = arith.constant 0 : i32
    %c0_i32_1 = arith.constant 0 : i32
    return %c0_i32, %c0_i32_0 : i32, i32
  }
  func.func @transform_6(%arg0: i32) -> (i32, i32) {
    %c0_i32 = arith.constant 0 : i32
    %c0_i32_0 = arith.constant 0 : i32
    %c0_i32_1 = arith.constant 0 : i32
    return %c0_i32, %c0_i32_0 : i32, i32
  }
  func.func @transform_7(%arg0: i32) -> (i32, i32) {
    %c0_i32 = arith.constant 0 : i32
    %c0_i32_0 = arith.constant 0 : i32
    %c0_i32_1 = arith.constant 0 : i32
    return %c0_i32, %c0_i32_0 : i32, i32
  }
  func.func @transform_8(%arg0: i32) -> (i32, i32) {
    %c0_i32 = arith.constant 0 : i32
    %c0_i32_0 = arith.constant 0 : i32
    %c0_i32_1 = arith.constant 0 : i32
    return %c0_i32, %c0_i32_0 : i32, i32
  }
  func.func @transform_9(%arg0: i32) -> (i32, i32) {
    %c0_i32 = arith.constant 0 : i32
    %c0_i32_0 = arith.constant 0 : i32
    %c0_i32_1 = arith.constant 0 : i32
    return %c0_i32, %c0_i32_0 : i32, i32
  }
  func.func @transform_10(%arg0: i32) -> (i32, i32) {
    %c0_i32 = arith.constant 0 : i32
    %c0_i32_0 = arith.constant 0 : i32
    %c0_i32_1 = arith.constant 0 : i32
    return %c0_i32, %c0_i32_0 : i32, i32
  }
  func.func @transform_11(%arg0: i32) -> (i32, i32, i32) {
    %c0_i32 = arith.constant 0 : i32
    %c0_i32_0 = arith.constant 0 : i32
    %c0_i32_1 = arith.constant 0 : i32
    return %arg0, %c0_i32, %c0_i32_0 : i32, i32, i32
  }
}

</mosaic_0001>

<llo_original>
// kernel: tpu_custom_call.1
$region0: #{tpu_custom_call.1}
  #allocation0 [shape = 'u32[]', space=smem, size = 0x4, offset = 0x4, fixed_abs, tag = 'smem constant byte address 0x4 - core index']
  #allocation1 [shape = 'u32[144,128]{1,0:T(1,128)}', space=vmem, size = 0x12000, scoped, tag = 'internal scratch']
  %s0 = inlined_call_operand.hbm [shape: f32[2,8,32], index: 0, kind: input, shape index: {}]
  %s1 = inlined_call_operand.hbm [shape: f32[2,8,32], index: 1, kind: input, shape index: {}]
  %s2 = inlined_call_operand.vmem [shape: f32[32,32], index: 2, kind: input, shape index: {}]
  %s3 = inlined_call_operand.vmem [shape: f32[32,64], index: 3, kind: input, shape index: {}]
  %s4 = inlined_call_operand.vmem [shape: f32[32,32], index: 4, kind: input, shape index: {}]
  %s5 = inlined_call_operand.hbm [shape: f32[32,64], index: 5, kind: input, shape index: {}]
  %s6 = inlined_call_operand.vmem [shape: f32[64,32], index: 6, kind: input, shape index: {}]
  %s7 = inlined_call_operand.hbm [shape: f32[3,32], index: 7, kind: input, shape index: {}]
  %s8 = inlined_call_operand.vmem [shape: f32[1,64], index: 8, kind: input, shape index: {}]
  %s9 = inlined_call_operand.vmem [shape: f32[1,64], index: 9, kind: input, shape index: {}]
  %s10 = inlined_call_operand.vmem [shape: f32[32,32], index: 10, kind: input, shape index: {}]
  %s11 = inlined_call_operand.hbm [shape: f32[2,8,32], index: 11, kind: output, shape index: {}]
  %s12 = sld [smem:[#allocation0]]
  $region70: #{tpu_custom_call.1} parent=0
    _
  %s14 = ssub.s32 1, %s12
  %s15 = scalar_select 0, %s14, %s12
  $region1: #{tpu_custom_call.1} parent=0
    #allocation2 [shape = 'u8[8192]{0}', space=vmem, size = 0x2000, scoped, tag = 'input window, operand 0, single buffered']
    #allocation3 [shape = 's32[1]{0}', space=sflag, size = 0x4, scoped, tag = 'scoped memory for tpu_custom_call.1']
    #allocation4 [shape = 's32[1]{0}', space=sflag, size = 0x4, scoped, tag = 'scoped memory for tpu_custom_call.1']
    #allocation5 [shape = 'u8[8192]{0}', space=vmem, size = 0x2000, scoped, tag = 'input window, operand 1, single buffered']
    #allocation6 [shape = 's32[1]{0}', space=sflag, size = 0x4, scoped, tag = 'scoped memory for tpu_custom_call.1']
    #allocation7 [shape = 'u8[16384]{0}', space=vmem, size = 0x4000, scoped, tag = 'input window, operand 5, single buffered']
    #allocation8 [shape = 'u8[2048]{0}', space=vmem, size = 0x800, scoped, tag = 'input window, operand 7, single buffered']
    #allocation9 [shape = 's32[1]{0}', space=sflag, size = 0x4, scoped, tag = 'scoped memory for tpu_custom_call.1']
    #allocation10 [shape = 'u8[8192]{0}', space=vmem, size = 0x2000, scoped, tag = 'output window, operand 0, single buffered']
    %16 = vsyncpa [#allocation3], 0
    %17 = vsyncpa [#allocation6], 0
    %18 = vsyncpa [#allocation9], 0
    %19 = vsyncpa [#allocation4], 0
    // Predicated region
    $region2: #{tpu_custom_call.1} parent=1 // pred_check
      _
    $region3: #{tpu_custom_call.1} parent=1 // pred_check_branch
      %21 = sbr.rel (0) target = $region5
    $region4: #{tpu_custom_call.1} parent=1 // pred_region
      %s23 = ssub.s32 256, 256
      %24 = vsyncadd [#allocation3], %s23
      %s25 = sshll.u32 [#allocation2], 4
      %s26 = int_to_ptr.vmem [resolvable:$true] %s25
      %31 = dma.hbm_to_vmem [thread:$0]  %s0, 256, %s26, [#allocation3], 128, 128, 8
    $region5: #{tpu_custom_call.1} parent=1 // pred_fallthru
      _
    // Predicated region
    $region6: #{tpu_custom_call.1} parent=1 // pred_check
      _
    $region7: #{tpu_custom_call.1} parent=1 // pred_check_branch
      %33 = sbr.rel (0) target = $region9
    $region8: #{tpu_custom_call.1} parent=1 // pred_region
      %s35 = ssub.s32 256, 256
      %36 = vsyncadd [#allocation6], %s35
      %s37 = sshll.u32 [#allocation5], 4
      %s38 = int_to_ptr.vmem [resolvable:$true] %s37
      %43 = dma.hbm_to_vmem [thread:$0]  %s1, 256, %s38, [#allocation6], 128, 128, 8
    $region9: #{tpu_custom_call.1} parent=1 // pred_fallthru
      _
    // Predicated region
    $region10: #{tpu_custom_call.1} parent=1 // pred_check
      _
    $region11: #{tpu_custom_call.1} parent=1 // pred_check_branch
      %45 = sbr.rel (0) target = $region13
    $region12: #{tpu_custom_call.1} parent=1 // pred_region
      _
    $region13: #{tpu_custom_call.1} parent=1 // pred_fallthru
      _
    // Predicated region
    $region14: #{tpu_custom_call.1} parent=1 // pred_check
      _
    $region15: #{tpu_custom_call.1} parent=1 // pred_check_branch
      %47 = sbr.rel (0) target = $region17
    $region16: #{tpu_custom_call.1} parent=1 // pred_region
      _
    $region17: #{tpu_custom_call.1} parent=1 // pred_fallthru
      _
    // Predicated region
    $region18: #{tpu_custom_call.1} parent=1 // pred_check
      _
    $region19: #{tpu_custom_call.1} parent=1 // pred_check_branch
      %49 = sbr.rel (0) target = $region21
    $region20: #{tpu_custom_call.1} parent=1 // pred_region
      _
    $region21: #{tpu_custom_call.1} parent=1 // pred_fallthru
      _
    // Predicated region
    $region22: #{tpu_custom_call.1} parent=1 // pred_check
      _
    $region23: #{tpu_custom_call.1} parent=1 // pred_check_branch
      %51 = sbr.rel (0) target = $region25
    $region24: #{tpu_custom_call.1} parent=1 // pred_region
      %s53 = ssub.s32 512, 512
      %54 = vsyncadd [#allocation6], %s53
      %s55 = sshll.u32 [#allocation7], 4
      %s56 = int_to_ptr.vmem [resolvable:$true] %s55
      %61 = dma.hbm_to_vmem [thread:$0]  %s5, 512, %s56, [#allocation6], 128, 128, 8
    $region25: #{tpu_custom_call.1} parent=1 // pred_fallthru
      _
    // Predicated region
    $region26: #{tpu_custom_call.1} parent=1 // pred_check
      _
    $region27: #{tpu_custom_call.1} parent=1 // pred_check_branch
      %63 = sbr.rel (0) target = $region29
    $region28: #{tpu_custom_call.1} parent=1 // pred_region
      _
    $region29: #{tpu_custom_call.1} parent=1 // pred_fallthru
      _
    // Predicated region
    $region30: #{tpu_custom_call.1} parent=1 // pred_check
      _
    $region31: #{tpu_custom_call.1} parent=1 // pred_check_branch
      %65 = sbr.rel (0) target = $region33
    $region32: #{tpu_custom_call.1} parent=1 // pred_region
      %s67 = ssub.s32 64, 64
      %68 = vsyncadd [#allocation9], %s67
      %s70 = sshll.u32 [#allocation8], 4
      %s71 = int_to_ptr.vmem [resolvable:$true] %s70
      %73 = dma.hbm_to_vmem [thread:$0]  %s7, 64, %s71, [#allocation9]
    $region33: #{tpu_custom_call.1} parent=1 // pred_fallthru
      _
    // Predicated region
    $region34: #{tpu_custom_call.1} parent=1 // pred_check
      _
    $region35: #{tpu_custom_call.1} parent=1 // pred_check_branch
      %75 = sbr.rel (0) target = $region37
    $region36: #{tpu_custom_call.1} parent=1 // pred_region
      _
    $region37: #{tpu_custom_call.1} parent=1 // pred_fallthru
      _
    // Predicated region
    $region38: #{tpu_custom_call.1} parent=1 // pred_check
      _
    $region39: #{tpu_custom_call.1} parent=1 // pred_check_branch
      %77 = sbr.rel (0) target = $region41
    $region40: #{tpu_custom_call.1} parent=1 // pred_region
      _
    $region41: #{tpu_custom_call.1} parent=1 // pred_fallthru
      _
    // Predicated region
    $region42: #{tpu_custom_call.1} parent=1 // pred_check
      _
    $region43: #{tpu_custom_call.1} parent=1 // pred_check_branch
      %79 = sbr.rel (0) target = $region45
    $region44: #{tpu_custom_call.1} parent=1 // pred_region
      _
    $region45: #{tpu_custom_call.1} parent=1 // pred_fallthru
      _
    // Predicated region
    $region46: #{tpu_custom_call.1} parent=1 // pred_check
      _
    $region47: #{tpu_custom_call.1} parent=1 // pred_check_branch
      %81 = sbr.rel (0) target = $region49
    $region48: #{tpu_custom_call.1} parent=1 // pred_region
      %82 = dma.done [#allocation3], 256
    $region49: #{tpu_custom_call.1} parent=1 // pred_fallthru
      _
    // Predicated region
    $region50: #{tpu_custom_call.1} parent=1 // pred_check
      _
    $region51: #{tpu_custom_call.1} parent=1 // pred_check_branch
      %84 = sbr.rel (0) target = $region53
    $region52: #{tpu_custom_call.1} parent=1 // pred_region
      %85 = dma.done [#allocation6], 256
    $region53: #{tpu_custom_call.1} parent=1 // pred_fallthru
      _
    // Predicated region
    $region54: #{tpu_custom_call.1} parent=1 // pred_check
      _
    $region55: #{tpu_custom_call.1} parent=1 // pred_check_branch
      %87 = sbr.rel (0) target = $region57
    $region56: #{tpu_custom_call.1} parent=1 // pred_region
      %88 = dma.done [#allocation6], 512
    $region57: #{tpu_custom_call.1} parent=1 // pred_fallthru
      _
    // Predicated region
    $region58: #{tpu_custom_call.1} parent=1 // pred_check
      _
    $region59: #{tpu_custom_call.1} parent=1 // pred_check_branch
      %90 = sbr.rel (0) target = $region61
    $region60: #{tpu_custom_call.1} parent=1 // pred_region
      %91 = dma.done [#allocation9], 64
    $region61: #{tpu_custom_call.1} parent=1 // pred_fallthru
      _
    %v92 = vld [vmem:[#allocation2] sm:$0xff]
    %v93 = vld [vmem:[#allocation2 + $0x8] sm:$0xff]
    %v94 = vld [vmem:[#allocation5] sm:$0xff]
    %v95 = vld [vmem:[#allocation5 + $0x8] sm:$0xff]
    %v96 = vld [vmem:[#allocation8] sm:$0x1]
    %v97 = vld [vmem:[#allocation8 + $0x1] sm:$0x1]
    %v98 = vld [vmem:[#allocation8 + $0x2] sm:$0x1]
    %v99 = vld [vmem:[%s2] sm:$0xff]
    %v100 = vld [vmem:[%s2 + $0x8] sm:$0xff]
    %v101 = vld [vmem:[%s2 + $0x10] sm:$0xff]
    %v102 = vld [vmem:[%s2 + $0x18] sm:$0xff]
    %v103 = vlaneseq
    %v104 = vshrl.u32 %v103, 7
    %v105 = vsub.s32 0, %v104
    %v106 = vrot.slane %v96, %v105
    %vm107 = vcmask 261120
    %v109 = vsel %vm107, %v92, 0
    %v112 = vsel %vm107, %v93, 0
    %114 = vmatprep.subr.mxu0 0.0
    %115 = vmatpush1.msra.mxu0 %v99
    %116 = vmatprep.subr.mxu0 0.0
    %117 = vmatpush1.msra.mxu0 %v100
    %118 = vmatprep.subr.mxu0 0.0
    %119 = vmatpush1.msra.mxu0 %v101
    %120 = vmatprep.subr.mxu0 0.0
    %121 = vmatpush1.msra.mxu0 %v102
    %122 = vmatprep.subr.mxu0 0.0
    %123 = vmatpush1.msra.mxu0 0.0
    %124 = vmatprep.subr.mxu0 0.0
    %125 = vmatpush1.msra.mxu0 0.0
    %126 = vmatprep.subr.mxu0 0.0
    %127 = vmatpush1.msra.mxu0 0.0
    %128 = vmatprep.subr.mxu0 0.0
    %129 = vmatpush1.msra.mxu0 0.0
    %130 = vmatprep.subr.mxu0 0.0
    %131 = vmatpush1.msra.mxu0 0.0
    %132 = vmatprep.subr.mxu0 0.0
    %133 = vmatpush1.msra.mxu0 0.0
    %134 = vmatprep.subr.mxu0 0.0
    %135 = vmatpush1.msra.mxu0 0.0
    %136 = vmatprep.subr.mxu0 0.0
    %137 = vmatpush1.msra.mxu0 0.0
    %138 = vmatprep.subr.mxu0 0.0
    %139 = vmatpush1.msra.mxu0 0.0
    %140 = vmatprep.subr.mxu0 0.0
    %141 = vmatpush1.msra.mxu0 0.0
    %142 = vmatprep.subr.mxu0 0.0
    %143 = vmatpush1.msra.mxu0 0.0
    %144 = vmatprep.subr.mxu0 0.0
    %145 = vmatpush1.msra.mxu0 0.0
    %146 = vmatprep.subr.mxu0 0.0
    %147 = vmatpush1.msra.mxu0 0.0
    %148 = vmatprep.subr.mxu0 0.0
    %149 = vmatpush1.msra.mxu0 0.0
    %150 = vmatprep.subr.mxu0 0.0
    %151 = vmatpush1.msra.mxu0 0.0
    %152 = vmatprep.subr.mxu0 0.0
    %153 = vmatpush1.msra.mxu0 0.0
    %154 = vmatprep.subr.mxu0 0.0
    %155 = vmatpush1.msra.mxu0 0.0
    %156 = vmatprep.subr.mxu0 0.0
    %157 = vmatpush1.msra.mxu0 0.0
    %158 = vmatprep.subr.mxu0 0.0
    %159 = vmatpush1.msra.mxu0 0.0
    %160 = vmatprep.subr.mxu0 0.0
    %161 = vmatpush1.msra.mxu0 0.0
    %162 = vmatprep.subr.mxu0 0.0
    %163 = vmatpush1.msra.mxu0 0.0
    %164 = vmatprep.subr.mxu0 0.0
    %165 = vmatpush1.msra.mxu0 0.0
    %166 = vmatprep.subr.mxu0 0.0
    %167 = vmatpush1.msra.mxu0 0.0
    %168 = vmatprep.subr.mxu0 0.0
    %169 = vmatpush1.msra.mxu0 0.0
    %170 = vmatprep.subr.mxu0 0.0
    %171 = vmatpush1.msra.mxu0 0.0
    %172 = vmatprep.subr.mxu0 0.0
    %173 = vmatpush1.msra.mxu0 0.0
    %174 = vmatprep.subr.mxu0 0.0
    %175 = vmatpush1.msra.mxu0 0.0
    %176 = vmatprep.subr.mxu0 0.0
    %177 = vmatpush1.msra.mxu0 0.0
    %178 = vmatprep.mubr.f32.mxu0 0.0
    %179 = vmatmul.mubr.f32.gmra.mrb[0].mxu0 %v109
    %v180 = vpop.f32.mrb[0].mxu0
    %v181 = vadd.f32 %v106, %v180
    %v182 = vpop.f32.mrb[0].mxu0
    %183 = vmatprep.mubr.f32.mxu0 0.0
    %184 = vmatmul.mubr.f32.gmra.mrb[0].mxu0 %v112
    %v185 = vpop.f32.mrb[0].mxu0
    %v186 = vadd.f32 %v106, %v185
    %v187 = vpop.f32.mrb[0].mxu0
    %188 = vdwg.mxu0
    %v189 = vld [vmem:[%s3] sm:$0xff]
    %v190 = vld [vmem:[%s3 + $0x8] sm:$0xff]
    %v191 = vld [vmem:[%s3 + $0x10] sm:$0xff]
    %v192 = vld [vmem:[%s3 + $0x18] sm:$0xff]
    %v193 = vld [vmem:[%s8] sm:$0x1]
    %v195 = vlaneseq
    %v196 = vshrl.u32 %v195, 7
    %v197 = vsub.s32 0, %v196
    %v198 = vrot.slane %v193, %v197
    %v201 = vsel %vm107, %v94, 0
    %v204 = vsel %vm107, %v95, 0
    %206 = vmatprep.subr.mxu0 0.0
    %207 = vmatpush1.msra.mxu0 %v189
    %208 = vmatprep.subr.mxu0 0.0
    %209 = vmatpush1.msra.mxu0 %v190
    %210 = vmatprep.subr.mxu0 0.0
    %211 = vmatpush1.msra.mxu0 %v191
    %212 = vmatprep.subr.mxu0 0.0
    %213 = vmatpush1.msra.mxu0 %v192
    %214 = vmatprep.subr.mxu0 0.0
    %215 = vmatpush1.msra.mxu0 0.0
    %216 = vmatprep.subr.mxu0 0.0
    %217 = vmatpush1.msra.mxu0 0.0
    %218 = vmatprep.subr.mxu0 0.0
    %219 = vmatpush1.msra.mxu0 0.0
    %220 = vmatprep.subr.mxu0 0.0
    %221 = vmatpush1.msra.mxu0 0.0
    %222 = vmatprep.subr.mxu0 0.0
    %223 = vmatpush1.msra.mxu0 0.0
    %224 = vmatprep.subr.mxu0 0.0
    %225 = vmatpush1.msra.mxu0 0.0
    %226 = vmatprep.subr.mxu0 0.0
    %227 = vmatpush1.msra.mxu0 0.0
    %228 = vmatprep.subr.mxu0 0.0
    %229 = vmatpush1.msra.mxu0 0.0
    %230 = vmatprep.subr.mxu0 0.0
    %231 = vmatpush1.msra.mxu0 0.0
    %232 = vmatprep.subr.mxu0 0.0
    %233 = vmatpush1.msra.mxu0 0.0
    %234 = vmatprep.subr.mxu0 0.0
    %235 = vmatpush1.msra.mxu0 0.0
    %236 = vmatprep.subr.mxu0 0.0
    %237 = vmatpush1.msra.mxu0 0.0
    %238 = vmatprep.subr.mxu0 0.0
    %239 = vmatpush1.msra.mxu0 0.0
    %240 = vmatprep.subr.mxu0 0.0
    %241 = vmatpush1.msra.mxu0 0.0
    %242 = vmatprep.subr.mxu0 0.0
    %243 = vmatpush1.msra.mxu0 0.0
    %244 = vmatprep.subr.mxu0 0.0
    %245 = vmatpush1.msra.mxu0 0.0
    %246 = vmatprep.subr.mxu0 0.0
    %247 = vmatpush1.msra.mxu0 0.0
    %248 = vmatprep.subr.mxu0 0.0
    %249 = vmatpush1.msra.mxu0 0.0
    %250 = vmatprep.subr.mxu0 0.0
    %251 = vmatpush1.msra.mxu0 0.0
    %252 = vmatprep.subr.mxu0 0.0
    %253 = vmatpush1.msra.mxu0 0.0
    %254 = vmatprep.subr.mxu0 0.0
    %255 = vmatpush1.msra.mxu0 0.0
    %256 = vmatprep.subr.mxu0 0.0
    %257 = vmatpush1.msra.mxu0 0.0
    %258 = vmatprep.subr.mxu0 0.0
    %259 = vmatpush1.msra.mxu0 0.0
    %260 = vmatprep.subr.mxu0 0.0
    %261 = vmatpush1.msra.mxu0 0.0
    %262 = vmatprep.subr.mxu0 0.0
    %263 = vmatpush1.msra.mxu0 0.0
    %264 = vmatprep.subr.mxu0 0.0
    %265 = vmatpush1.msra.mxu0 0.0
    %266 = vmatprep.subr.mxu0 0.0
    %267 = vmatpush1.msra.mxu0 0.0
    %268 = vmatprep.subr.mxu0 0.0
    %269 = vmatpush1.msra.mxu0 0.0
    %270 = vmatprep.mubr.f32.mxu0 0.0
    %271 = vmatmul.mubr.f32.gmra.mrb[0].mxu0 %v201
    %v272 = vpop.f32.mrb[0].mxu0
    %v273 = vadd.f32 %v198, %v272
    %v274 = vpop.f32.mrb[0].mxu0
    %275 = vmatprep.mubr.f32.mxu0 0.0
    %276 = vmatmul.mubr.f32.gmra.mrb[0].mxu0 %v204
    %v277 = vpop.f32.mrb[0].mxu0
    %v278 = vadd.f32 %v198, %v277
    %v279 = vpop.f32.mrb[0].mxu0
    %280 = vdwg.mxu0
    %v281 = vld [vmem:[%s10] sm:$0xff]
    %v282 = vld [vmem:[%s10 + $0x8] sm:$0xff]
    %v283 = vld [vmem:[%s10 + $0x10] sm:$0xff]
    %v284 = vld [vmem:[%s10 + $0x18] sm:$0xff]
    %v285 = vmul.f32 %v181, %v281
    %v286 = vmul.f32 %v181, %v282
    %v287 = vmul.f32 %v181, %v283
    %v288 = vmul.f32 %v181, %v284
    %v290 = vsel %vm107, %v285, 0
    %v293 = vsel %vm107, %v286, 0
    %v296 = vsel %vm107, %v287, 0
    %v299 = vsel %vm107, %v288, 0
    %v302 = vsel %vm107, %v273, 0
    %304 = vmatprep.subr.mxu0 0.0
    %305 = vmatpush1.xpose.msra.mxu0 %v302
    %306 = vmatprep.subr.mxu0 0.0
    %307 = vmatpush1.xpose.msra.mxu0 0.0
    %308 = vmatprep.subr.mxu0 0.0
    %309 = vmatpush1.xpose.msra.mxu0 0.0
    %310 = vmatprep.subr.mxu0 0.0
    %311 = vmatpush1.xpose.msra.mxu0 0.0
    %312 = vmatprep.subr.mxu0 0.0
    %313 = vmatpush1.xpose.msra.mxu0 0.0
    %314 = vmatprep.subr.mxu0 0.0
    %315 = vmatpush1.xpose.msra.mxu0 0.0
    %316 = vmatprep.subr.mxu0 0.0
    %317 = vmatpush1.xpose.msra.mxu0 0.0
    %318 = vmatprep.subr.mxu0 0.0
    %319 = vmatpush1.xpose.msra.mxu0 0.0
    %320 = vmatprep.subr.mxu0 0.0
    %321 = vmatpush1.xpose.msra.mxu0 0.0
    %322 = vmatprep.subr.mxu0 0.0
    %323 = vmatpush1.xpose.msra.mxu0 0.0
    %324 = vmatprep.subr.mxu0 0.0
    %325 = vmatpush1.xpose.msra.mxu0 0.0
    %326 = vmatprep.subr.mxu0 0.0
    %327 = vmatpush1.xpose.msra.mxu0 0.0
    %328 = vmatprep.subr.mxu0 0.0
    %329 = vmatpush1.xpose.msra.mxu0 0.0
    %330 = vmatprep.subr.mxu0 0.0
    %331 = vmatpush1.xpose.msra.mxu0 0.0
    %332 = vmatprep.subr.mxu0 0.0
    %333 = vmatpush1.xpose.msra.mxu0 0.0
    %334 = vmatprep.subr.mxu0 0.0
    %335 = vmatpush1.xpose.msra.mxu0 0.0
    %336 = vmatprep.subr.mxu0 0.0
    %337 = vmatpush1.xpose.msra.mxu0 0.0
    %338 = vmatprep.subr.mxu0 0.0
    %339 = vmatpush1.xpose.msra.mxu0 0.0
    %340 = vmatprep.subr.mxu0 0.0
    %341 = vmatpush1.xpose.msra.mxu0 0.0
    %342 = vmatprep.subr.mxu0 0.0
    %343 = vmatpush1.xpose.msra.mxu0 0.0
    %344 = vmatprep.subr.mxu0 0.0
    %345 = vmatpush1.xpose.msra.mxu0 0.0
    %346 = vmatprep.subr.mxu0 0.0
    %347 = vmatpush1.xpose.msra.mxu0 0.0
    %348 = vmatprep.subr.mxu0 0.0
    %349 = vmatpush1.xpose.msra.mxu0 0.0
    %350 = vmatprep.subr.mxu0 0.0
    %351 = vmatpush1.xpose.msra.mxu0 0.0
    %352 = vmatprep.subr.mxu0 0.0
    %353 = vmatpush1.xpose.msra.mxu0 0.0
    %354 = vmatprep.subr.mxu0 0.0
    %355 = vmatpush1.xpose.msra.mxu0 0.0
    %356 = vmatprep.subr.mxu0 0.0
    %357 = vmatpush1.xpose.msra.mxu0 0.0
    %358 = vmatprep.subr.mxu0 0.0
    %359 = vmatpush1.xpose.msra.mxu0 0.0
    %360 = vmatprep.subr.mxu0 0.0
    %361 = vmatpush1.xpose.msra.mxu0 0.0
    %362 = vmatprep.subr.mxu0 0.0
    %363 = vmatpush1.xpose.msra.mxu0 0.0
    %364 = vmatprep.subr.mxu0 0.0
    %365 = vmatpush1.xpose.msra.mxu0 0.0
    %366 = vmatprep.subr.mxu0 0.0
    %367 = vmatpush1.xpose.msra.mxu0 0.0
    %368 = vmatprep.mubr.f32.mxu0 0.0
    %369 = vmatmul.mubr.f32.gmra.mrb[0].mxu0 %v290
    %v370 = vpop.f32.mrb[0].mxu0
    %v371 = vadd.f32 0.0, %v370
    %v372 = vpop.f32.mrb[0].mxu0
    %373 = vmatprep.mubr.f32.mxu0 0.0
    %374 = vmatmul.mubr.f32.gmra.mrb[0].mxu0 %v293
    %v375 = vpop.f32.mrb[0].mxu0
    %v376 = vadd.f32 0.0, %v375
    %v377 = vpop.f32.mrb[0].mxu0
    %378 = vmatprep.mubr.f32.mxu0 0.0
    %379 = vmatmul.mubr.f32.gmra.mrb[0].mxu0 %v296
    %v380 = vpop.f32.mrb[0].mxu0
    %v381 = vadd.f32 0.0, %v380
    %v382 = vpop.f32.mrb[0].mxu0
    %383 = vmatprep.mubr.f32.mxu0 0.0
    %384 = vmatmul.mubr.f32.gmra.mrb[0].mxu0 %v299
    %v385 = vpop.f32.mrb[0].mxu0
    %v386 = vadd.f32 0.0, %v385
    %v387 = vpop.f32.mrb[0].mxu0
    %388 = vdwg.mxu0
    %v389 = vmul.f32 %v371, 0.35355338
    %v390 = vmul.f32 %v376, 0.35355338
    %v391 = vmul.f32 %v381, 0.35355338
    %v392 = vmul.f32 %v386, 0.35355338
    %vm393 = vcmask 64512
    %v394 = vsel %vm393, %v389, -inf
    %395 = vmax.xlane.f32.xlu0 %v394
    %v396 = vpop.xlane.xlu0 %395
    %v397 = vsel %vm393, %v390, -inf
    %398 = vmax.xlane.f32.xlu0 %v397
    %v399 = vpop.xlane.xlu0 %398
    %v400 = vsel %vm393, %v391, -inf
    %401 = vmax.xlane.f32.xlu0 %v400
    %v402 = vpop.xlane.xlu0 %401
    %v403 = vsel %vm393, %v392, -inf
    %404 = vmax.xlane.f32.xlu0 %v403
    %v405 = vpop.xlane.xlu0 %404
    %v406 = vsub.f32 %v389, %v396
    %v407 = vsub.f32 %v390, %v399
    %v408 = vsub.f32 %v391, %v402
    %v409 = vsub.f32 %v392, %v405
    %v410 = vmul.f32 %v406, 1.442695
    %v411 = vpow.pop %v410
    %v412 = vmul.f32 %v407, 1.442695
    %v413 = vpow.pop %v412
    %v414 = vmul.f32 %v408, 1.442695
    %v415 = vpow.pop %v414
    %v416 = vmul.f32 %v409, 1.442695
    %v417 = vpow.pop %v416
    %v418 = vsel %vm393, %v411, 0.0
    %419 = vadd.xlane.f32.xlu0 %v418
    %v420 = vpop.xlane.xlu0 %419
    %v421 = vsel %vm393, %v413, 0.0
    %422 = vadd.xlane.f32.xlu0 %v421
    %v423 = vpop.xlane.xlu0 %422
    %v424 = vsel %vm393, %v415, 0.0
    %425 = vadd.xlane.f32.xlu0 %v424
    %v426 = vpop.xlane.xlu0 %425
    %v427 = vsel %vm393, %v417, 0.0
    %428 = vadd.xlane.f32.xlu0 %v427
    %v429 = vpop.xlane.xlu0 %428
    %v430 = vrcp.pop %v420
    %v431 = vrcp.pop %v423
    %v432 = vrcp.pop %v426
    %v433 = vrcp.pop %v429
    %v434 = vmul.f32 %v411, %v430
    %v435 = vmul.f32 %v413, %v431
    %v436 = vmul.f32 %v415, %v432
    %v437 = vmul.f32 %v417, %v433
    %438 = vrot.lane.b32.xlu0 %v273, 96
    %v439 = vpop.permute.xlu0 %438
    %v442 = vsel %vm393, %v434, 0
    %v445 = vsel %vm393, %v435, 0
    %v448 = vsel %vm393, %v436, 0
    %v451 = vsel %vm393, %v437, 0
    %453 = vmatprep.subr.mxu0 0.0
    %454 = vmatpush1.msra.mxu0 %v439
    %455 = vmatprep.subr.mxu0 0.0
    %456 = vmatpush1.msra.mxu0 0.0
    %457 = vmatprep.subr.mxu0 0.0
    %458 = vmatpush1.msra.mxu0 0.0
    %459 = vmatprep.subr.mxu0 0.0
    %460 = vmatpush1.msra.mxu0 0.0
    %461 = vmatprep.subr.mxu0 0.0
    %462 = vmatpush1.msra.mxu0 0.0
    %463 = vmatprep.subr.mxu0 0.0
    %464 = vmatpush1.msra.mxu0 0.0
    %465 = vmatprep.subr.mxu0 0.0
    %466 = vmatpush1.msra.mxu0 0.0
    %467 = vmatprep.subr.mxu0 0.0
    %468 = vmatpush1.msra.mxu0 0.0
    %469 = vmatprep.subr.mxu0 0.0
    %470 = vmatpush1.msra.mxu0 0.0
    %471 = vmatprep.subr.mxu0 0.0
    %472 = vmatpush1.msra.mxu0 0.0
    %473 = vmatprep.subr.mxu0 0.0
    %474 = vmatpush1.msra.mxu0 0.0
    %475 = vmatprep.subr.mxu0 0.0
    %476 = vmatpush1.msra.mxu0 0.0
    %477 = vmatprep.subr.mxu0 0.0
    %478 = vmatpush1.msra.mxu0 0.0
    %479 = vmatprep.subr.mxu0 0.0
    %480 = vmatpush1.msra.mxu0 0.0
    %481 = vmatprep.subr.mxu0 0.0
    %482 = vmatpush1.msra.mxu0 0.0
    %483 = vmatprep.subr.mxu0 0.0
    %484 = vmatpush1.msra.mxu0 0.0
    %485 = vmatprep.subr.mxu0 0.0
    %486 = vmatpush1.msra.mxu0 0.0
    %487 = vmatprep.subr.mxu0 0.0
    %488 = vmatpush1.msra.mxu0 0.0
    %489 = vmatprep.subr.mxu0 0.0
    %490 = vmatpush1.msra.mxu0 0.0
    %491 = vmatprep.subr.mxu0 0.0
    %492 = vmatpush1.msra.mxu0 0.0
    %493 = vmatprep.subr.mxu0 0.0
    %494 = vmatpush1.msra.mxu0 0.0
    %495 = vmatprep.subr.mxu0 0.0
    %496 = vmatpush1.msra.mxu0 0.0
    %497 = vmatprep.subr.mxu0 0.0
    %498 = vmatpush1.msra.mxu0 0.0
    %499 = vmatprep.subr.mxu0 0.0
    %500 = vmatpush1.msra.mxu0 0.0
    %501 = vmatprep.subr.mxu0 0.0
    %502 = vmatpush1.msra.mxu0 0.0
    %503 = vmatprep.subr.mxu0 0.0
    %504 = vmatpush1.msra.mxu0 0.0
    %505 = vmatprep.subr.mxu0 0.0
    %506 = vmatpush1.msra.mxu0 0.0
    %507 = vmatprep.subr.mxu0 0.0
    %508 = vmatpush1.msra.mxu0 0.0
    %509 = vmatprep.subr.mxu0 0.0
    %510 = vmatpush1.msra.mxu0 0.0
    %511 = vmatprep.subr.mxu0 0.0
    %512 = vmatpush1.msra.mxu0 0.0
    %513 = vmatprep.subr.mxu0 0.0
    %514 = vmatpush1.msra.mxu0 0.0
    %515 = vmatprep.subr.mxu0 0.0
    %516 = vmatpush1.msra.mxu0 0.0
    %517 = vmatprep.mubr.f32.mxu0 0.0
    %518 = vmatmul.mubr.f32.gmra.mrb[0].mxu0 %v442
    %v519 = vpop.f32.mrb[0].mxu0
    %v520 = vadd.f32 0.0, %v519
    %v521 = vpop.f32.mrb[0].mxu0
    %522 = vmatprep.mubr.f32.mxu0 0.0
    %523 = vmatmul.mubr.f32.gmra.mrb[0].mxu0 %v445
    %v524 = vpop.f32.mrb[0].mxu0
    %v525 = vadd.f32 0.0, %v524
    %v526 = vpop.f32.mrb[0].mxu0
    %527 = vmatprep.mubr.f32.mxu0 0.0
    %528 = vmatmul.mubr.f32.gmra.mrb[0].mxu0 %v448
    %v529 = vpop.f32.mrb[0].mxu0
    %v530 = vadd.f32 0.0, %v529
    %v531 = vpop.f32.mrb[0].mxu0
    %532 = vmatprep.mubr.f32.mxu0 0.0
    %533 = vmatmul.mubr.f32.gmra.mrb[0].mxu0 %v451
    %v534 = vpop.f32.mrb[0].mxu0
    %v535 = vadd.f32 0.0, %v534
    %v536 = vpop.f32.mrb[0].mxu0
    %537 = vdwg.mxu0
    %v538 = vmul.f32 %v520, %v281
    %v539 = vmul.f32 %v525, %v282
    %v540 = vmul.f32 %v530, %v283
    %v541 = vmul.f32 %v535, %v284
    %v542 = vadd.f32 %v538, %v539
    %v543 = vadd.f32 %v542, %v540
    %v544 = vadd.f32 %v543, %v541
    %v545 = vmul.f32 %v186, %v281
    %v546 = vmul.f32 %v186, %v282
    %v547 = vmul.f32 %v186, %v283
    %v548 = vmul.f32 %v186, %v284
    %v550 = vsel %vm107, %v545, 0
    %v553 = vsel %vm107, %v546, 0
    %v556 = vsel %vm107, %v547, 0
    %v559 = vsel %vm107, %v548, 0
    %v562 = vsel %vm107, %v278, 0
    %564 = vmatprep.subr.mxu0 0.0
    %565 = vmatpush1.xpose.msra.mxu0 %v562
    %566 = vmatprep.subr.mxu0 0.0
    %567 = vmatpush1.xpose.msra.mxu0 0.0
    %568 = vmatprep.subr.mxu0 0.0
    %569 = vmatpush1.xpose.msra.mxu0 0.0
    %570 = vmatprep.subr.mxu0 0.0
    %571 = vmatpush1.xpose.msra.mxu0 0.0
    %572 = vmatprep.subr.mxu0 0.0
    %573 = vmatpush1.xpose.msra.mxu0 0.0
    %574 = vmatprep.subr.mxu0 0.0
    %575 = vmatpush1.xpose.msra.mxu0 0.0
    %576 = vmatprep.subr.mxu0 0.0
    %577 = vmatpush1.xpose.msra.mxu0 0.0
    %578 = vmatprep.subr.mxu0 0.0
    %579 = vmatpush1.xpose.msra.mxu0 0.0
    %580 = vmatprep.subr.mxu0 0.0
    %581 = vmatpush1.xpose.msra.mxu0 0.0
    %582 = vmatprep.subr.mxu0 0.0
    %583 = vmatpush1.xpose.msra.mxu0 0.0
    %584 = vmatprep.subr.mxu0 0.0
    %585 = vmatpush1.xpose.msra.mxu0 0.0
    %586 = vmatprep.subr.mxu0 0.0
    %587 = vmatpush1.xpose.msra.mxu0 0.0
    %588 = vmatprep.subr.mxu0 0.0
    %589 = vmatpush1.xpose.msra.mxu0 0.0
    %590 = vmatprep.subr.mxu0 0.0
    %591 = vmatpush1.xpose.msra.mxu0 0.0
    %592 = vmatprep.subr.mxu0 0.0
    %593 = vmatpush1.xpose.msra.mxu0 0.0
    %594 = vmatprep.subr.mxu0 0.0
    %595 = vmatpush1.xpose.msra.mxu0 0.0
    %596 = vmatprep.subr.mxu0 0.0
    %597 = vmatpush1.xpose.msra.mxu0 0.0
    %598 = vmatprep.subr.mxu0 0.0
    %599 = vmatpush1.xpose.msra.mxu0 0.0
    %600 = vmatprep.subr.mxu0 0.0
    %601 = vmatpush1.xpose.msra.mxu0 0.0
    %602 = vmatprep.subr.mxu0 0.0
    %603 = vmatpush1.xpose.msra.mxu0 0.0
    %604 = vmatprep.subr.mxu0 0.0
    %605 = vmatpush1.xpose.msra.mxu0 0.0
    %606 = vmatprep.subr.mxu0 0.0
    %607 = vmatpush1.xpose.msra.mxu0 0.0
    %608 = vmatprep.subr.mxu0 0.0
    %609 = vmatpush1.xpose.msra.mxu0 0.0
    %610 = vmatprep.subr.mxu0 0.0
    %611 = vmatpush1.xpose.msra.mxu0 0.0
    %612 = vmatprep.subr.mxu0 0.0
    %613 = vmatpush1.xpose.msra.mxu0 0.0
    %614 = vmatprep.subr.mxu0 0.0
    %615 = vmatpush1.xpose.msra.mxu0 0.0
    %616 = vmatprep.subr.mxu0 0.0
    %617 = vmatpush1.xpose.msra.mxu0 0.0
    %618 = vmatprep.subr.mxu0 0.0
    %619 = vmatpush1.xpose.msra.mxu0 0.0
    %620 = vmatprep.subr.mxu0 0.0
    %621 = vmatpush1.xpose.msra.mxu0 0.0
    %622 = vmatprep.subr.mxu0 0.0
    %623 = vmatpush1.xpose.msra.mxu0 0.0
    %624 = vmatprep.subr.mxu0 0.0
    %625 = vmatpush1.xpose.msra.mxu0 0.0
    %626 = vmatprep.subr.mxu0 0.0
    %627 = vmatpush1.xpose.msra.mxu0 0.0
    %628 = vmatprep.mubr.f32.mxu0 0.0
    %629 = vmatmul.mubr.f32.gmra.mrb[0].mxu0 %v550
    %v630 = vpop.f32.mrb[0].mxu0
    %v631 = vadd.f32 0.0, %v630
    %v632 = vpop.f32.mrb[0].mxu0
    %633 = vmatprep.mubr.f32.mxu0 0.0
    %634 = vmatmul.mubr.f32.gmra.mrb[0].mxu0 %v553
    %v635 = vpop.f32.mrb[0].mxu0
    %v636 = vadd.f32 0.0, %v635
    %v637 = vpop.f32.mrb[0].mxu0
    %638 = vmatprep.mubr.f32.mxu0 0.0
    %639 = vmatmul.mubr.f32.gmra.mrb[0].mxu0 %v556
    %v640 = vpop.f32.mrb[0].mxu0
    %v641 = vadd.f32 0.0, %v640
    %v642 = vpop.f32.mrb[0].mxu0
    %643 = vmatprep.mubr.f32.mxu0 0.0
    %644 = vmatmul.mubr.f32.gmra.mrb[0].mxu0 %v559
    %v645 = vpop.f32.mrb[0].mxu0
    %v646 = vadd.f32 0.0, %v645
    %v647 = vpop.f32.mrb[0].mxu0
    %648 = vdwg.mxu0
    %v649 = vmul.f32 %v631, 0.35355338
    %v650 = vmul.f32 %v636, 0.35355338
    %v651 = vmul.f32 %v641, 0.35355338
    %v652 = vmul.f32 %v646, 0.35355338
    %v653 = vsel %vm393, %v649, -inf
    %654 = vmax.xlane.f32.xlu0 %v653
    %v655 = vpop.xlane.xlu0 %654
    %v656 = vsel %vm393, %v650, -inf
    %657 = vmax.xlane.f32.xlu0 %v656
    %v658 = vpop.xlane.xlu0 %657
    %v659 = vsel %vm393, %v651, -inf
    %660 = vmax.xlane.f32.xlu0 %v659
    %v661 = vpop.xlane.xlu0 %660
    %v662 = vsel %vm393, %v652, -inf
    %663 = vmax.xlane.f32.xlu0 %v662
    %v664 = vpop.xlane.xlu0 %663
    %v665 = vsub.f32 %v649, %v655
    %v666 = vsub.f32 %v650, %v658
    %v667 = vsub.f32 %v651, %v661
    %v668 = vsub.f32 %v652, %v664
    %v669 = vmul.f32 %v665, 1.442695
    %v670 = vpow.pop %v669
    %v671 = vmul.f32 %v666, 1.442695
    %v672 = vpow.pop %v671
    %v673 = vmul.f32 %v667, 1.442695
    %v674 = vpow.pop %v673
    %v675 = vmul.f32 %v668, 1.442695
    %v676 = vpow.pop %v675
    %v677 = vsel %vm393, %v670, 0.0
    %678 = vadd.xlane.f32.xlu0 %v677
    %v679 = vpop.xlane.xlu0 %678
    %v680 = vsel %vm393, %v672, 0.0
    %681 = vadd.xlane.f32.xlu0 %v680
    %v682 = vpop.xlane.xlu0 %681
    %v683 = vsel %vm393, %v674, 0.0
    %684 = vadd.xlane.f32.xlu0 %v683
    %v685 = vpop.xlane.xlu0 %684
    %v686 = vsel %vm393, %v676, 0.0
    %687 = vadd.xlane.f32.xlu0 %v686
    %v688 = vpop.xlane.xlu0 %687
    %v689 = vrcp.pop %v679
    %v690 = vrcp.pop %v682
    %v691 = vrcp.pop %v685
    %v692 = vrcp.pop %v688
    %v693 = vmul.f32 %v670, %v689
    %v694 = vmul.f32 %v672, %v690
    %v695 = vmul.f32 %v674, %v691
    %v696 = vmul.f32 %v676, %v692
    %697 = vrot.lane.b32.xlu0 %v278, 96
    %v698 = vpop.permute.xlu0 %697
    %v701 = vsel %vm393, %v693, 0
    %v704 = vsel %vm393, %v694, 0
    %v707 = vsel %vm393, %v695, 0
    %v710 = vsel %vm393, %v696, 0
    %712 = vmatprep.subr.mxu0 0.0
    %713 = vmatpush1.msra.mxu0 %v698
    %714 = vmatprep.subr.mxu0 0.0
    %715 = vmatpush1.msra.mxu0 0.0
    %716 = vmatprep.subr.mxu0 0.0
    %717 = vmatpush1.msra.mxu0 0.0
    %718 = vmatprep.subr.mxu0 0.0
    %719 = vmatpush1.msra.mxu0 0.0
    %720 = vmatprep.subr.mxu0 0.0
    %721 = vmatpush1.msra.mxu0 0.0
    %722 = vmatprep.subr.mxu0 0.0
    %723 = vmatpush1.msra.mxu0 0.0
    %724 = vmatprep.subr.mxu0 0.0
    %725 = vmatpush1.msra.mxu0 0.0
    %726 = vmatprep.subr.mxu0 0.0
    %727 = vmatpush1.msra.mxu0 0.0
    %728 = vmatprep.subr.mxu0 0.0
    %729 = vmatpush1.msra.mxu0 0.0
    %730 = vmatprep.subr.mxu0 0.0
    %731 = vmatpush1.msra.mxu0 0.0
    %732 = vmatprep.subr.mxu0 0.0
    %733 = vmatpush1.msra.mxu0 0.0
    %734 = vmatprep.subr.mxu0 0.0
    %735 = vmatpush1.msra.mxu0 0.0
    %736 = vmatprep.subr.mxu0 0.0
    %737 = vmatpush1.msra.mxu0 0.0
    %738 = vmatprep.subr.mxu0 0.0
    %739 = vmatpush1.msra.mxu0 0.0
    %740 = vmatprep.subr.mxu0 0.0
    %741 = vmatpush1.msra.mxu0 0.0
    %742 = vmatprep.subr.mxu0 0.0
    %743 = vmatpush1.msra.mxu0 0.0
    %744 = vmatprep.subr.mxu0 0.0
    %745 = vmatpush1.msra.mxu0 0.0
    %746 = vmatprep.subr.mxu0 0.0
    %747 = vmatpush1.msra.mxu0 0.0
    %748 = vmatprep.subr.mxu0 0.0
    %749 = vmatpush1.msra.mxu0 0.0
    %750 = vmatprep.subr.mxu0 0.0
    %751 = vmatpush1.msra.mxu0 0.0
    %752 = vmatprep.subr.mxu0 0.0
    %753 = vmatpush1.msra.mxu0 0.0
    %754 = vmatprep.subr.mxu0 0.0
    %755 = vmatpush1.msra.mxu0 0.0
    %756 = vmatprep.subr.mxu0 0.0
    %757 = vmatpush1.msra.mxu0 0.0
    %758 = vmatprep.subr.mxu0 0.0
    %759 = vmatpush1.msra.mxu0 0.0
    %760 = vmatprep.subr.mxu0 0.0
    %761 = vmatpush1.msra.mxu0 0.0
    %762 = vmatprep.subr.mxu0 0.0
    %763 = vmatpush1.msra.mxu0 0.0
    %764 = vmatprep.subr.mxu0 0.0
    %765 = vmatpush1.msra.mxu0 0.0
    %766 = vmatprep.subr.mxu0 0.0
    %767 = vmatpush1.msra.mxu0 0.0
    %768 = vmatprep.subr.mxu0 0.0
    %769 = vmatpush1.msra.mxu0 0.0
    %770 = vmatprep.subr.mxu0 0.0
    %771 = vmatpush1.msra.mxu0 0.0
    %772 = vmatprep.subr.mxu0 0.0
    %773 = vmatpush1.msra.mxu0 0.0
    %774 = vmatprep.subr.mxu0 0.0
    %775 = vmatpush1.msra.mxu0 0.0
    %776 = vmatprep.mubr.f32.mxu0 0.0
    %777 = vmatmul.mubr.f32.gmra.mrb[0].mxu0 %v701
    %v778 = vpop.f32.mrb[0].mxu0
    %v779 = vadd.f32 0.0, %v778
    %v780 = vpop.f32.mrb[0].mxu0
    %781 = vmatprep.mubr.f32.mxu0 0.0
    %782 = vmatmul.mubr.f32.gmra.mrb[0].mxu0 %v704
    %v783 = vpop.f32.mrb[0].mxu0
    %v784 = vadd.f32 0.0, %v783
    %v785 = vpop.f32.mrb[0].mxu0
    %786 = vmatprep.mubr.f32.mxu0 0.0
    %787 = vmatmul.mubr.f32.gmra.mrb[0].mxu0 %v707
    %v788 = vpop.f32.mrb[0].mxu0
    %v789 = vadd.f32 0.0, %v788
    %v790 = vpop.f32.mrb[0].mxu0
    %791 = vmatprep.mubr.f32.mxu0 0.0
    %792 = vmatmul.mubr.f32.gmra.mrb[0].mxu0 %v710
    %v793 = vpop.f32.mrb[0].mxu0
    %v794 = vadd.f32 0.0, %v793
    %v795 = vpop.f32.mrb[0].mxu0
    %796 = vdwg.mxu0
    %v797 = vmul.f32 %v779, %v281
    %v798 = vmul.f32 %v784, %v282
    %v799 = vmul.f32 %v789, %v283
    %v800 = vmul.f32 %v794, %v284
    %v801 = vadd.f32 %v797, %v798
    %v802 = vadd.f32 %v801, %v799
    %v803 = vadd.f32 %v802, %v800
    %v804 = vld [vmem:[%s4] sm:$0xff]
    %v805 = vld [vmem:[%s4 + $0x8] sm:$0xff]
    %v806 = vld [vmem:[%s4 + $0x10] sm:$0xff]
    %v807 = vld [vmem:[%s4 + $0x18] sm:$0xff]
    %v808 = vlaneseq
    %v809 = vshrl.u32 %v808, 7
    %v810 = vsub.s32 0, %v809
    %v811 = vrot.slane %v97, %v810
    %v813 = vsel %vm107, %v544, 0
    %v816 = vsel %vm107, %v803, 0
    %818 = vmatprep.subr.mxu0 0.0
    %819 = vmatpush1.msra.mxu0 %v804
    %820 = vmatprep.subr.mxu0 0.0
    %821 = vmatpush1.msra.mxu0 %v805
    %822 = vmatprep.subr.mxu0 0.0
    %823 = vmatpush1.msra.mxu0 %v806
    %824 = vmatprep.subr.mxu0 0.0
    %825 = vmatpush1.msra.mxu0 %v807
    %826 = vmatprep.subr.mxu0 0.0
    %827 = vmatpush1.msra.mxu0 0.0
    %828 = vmatprep.subr.mxu0 0.0
    %829 = vmatpush1.msra.mxu0 0.0
    %830 = vmatprep.subr.mxu0 0.0
    %831 = vmatpush1.msra.mxu0 0.0
    %832 = vmatprep.subr.mxu0 0.0
    %833 = vmatpush1.msra.mxu0 0.0
    %834 = vmatprep.subr.mxu0 0.0
    %835 = vmatpush1.msra.mxu0 0.0
    %836 = vmatprep.subr.mxu0 0.0
    %837 = vmatpush1.msra.mxu0 0.0
    %838 = vmatprep.subr.mxu0 0.0
    %839 = vmatpush1.msra.mxu0 0.0
    %840 = vmatprep.subr.mxu0 0.0
    %841 = vmatpush1.msra.mxu0 0.0
    %842 = vmatprep.subr.mxu0 0.0
    %843 = vmatpush1.msra.mxu0 0.0
    %844 = vmatprep.subr.mxu0 0.0
    %845 = vmatpush1.msra.mxu0 0.0
    %846 = vmatprep.subr.mxu0 0.0
    %847 = vmatpush1.msra.mxu0 0.0
    %848 = vmatprep.subr.mxu0 0.0
    %849 = vmatpush1.msra.mxu0 0.0
    %850 = vmatprep.subr.mxu0 0.0
    %851 = vmatpush1.msra.mxu0 0.0
    %852 = vmatprep.subr.mxu0 0.0
    %853 = vmatpush1.msra.mxu0 0.0
    %854 = vmatprep.subr.mxu0 0.0
    %855 = vmatpush1.msra.mxu0 0.0
    %856 = vmatprep.subr.mxu0 0.0
    %857 = vmatpush1.msra.mxu0 0.0
    %858 = vmatprep.subr.mxu0 0.0
    %859 = vmatpush1.msra.mxu0 0.0
    %860 = vmatprep.subr.mxu0 0.0
    %861 = vmatpush1.msra.mxu0 0.0
    %862 = vmatprep.subr.mxu0 0.0
    %863 = vmatpush1.msra.mxu0 0.0
    %864 = vmatprep.subr.mxu0 0.0
    %865 = vmatpush1.msra.mxu0 0.0
    %866 = vmatprep.subr.mxu0 0.0
    %867 = vmatpush1.msra.mxu0 0.0
    %868 = vmatprep.subr.mxu0 0.0
    %869 = vmatpush1.msra.mxu0 0.0
    %870 = vmatprep.subr.mxu0 0.0
    %871 = vmatpush1.msra.mxu0 0.0
    %872 = vmatprep.subr.mxu0 0.0
    %873 = vmatpush1.msra.mxu0 0.0
    %874 = vmatprep.subr.mxu0 0.0
    %875 = vmatpush1.msra.mxu0 0.0
    %876 = vmatprep.subr.mxu0 0.0
    %877 = vmatpush1.msra.mxu0 0.0
    %878 = vmatprep.subr.mxu0 0.0
    %879 = vmatpush1.msra.mxu0 0.0
    %880 = vmatprep.subr.mxu0 0.0
    %881 = vmatpush1.msra.mxu0 0.0
    %882 = vmatprep.mubr.f32.mxu0 0.0
    %883 = vmatmul.mubr.f32.gmra.mrb[0].mxu0 %v813
    %v884 = vpop.f32.mrb[0].mxu0
    %v885 = vadd.f32 %v811, %v884
    %v886 = vpop.f32.mrb[0].mxu0
    %887 = vmatprep.mubr.f32.mxu0 0.0
    %888 = vmatmul.mubr.f32.gmra.mrb[0].mxu0 %v816
    %v889 = vpop.f32.mrb[0].mxu0
    %v890 = vadd.f32 %v811, %v889
    %v891 = vpop.f32.mrb[0].mxu0
    %892 = vdwg.mxu0
    %v893 = vadd.f32 %v92, %v885
    %v894 = vadd.f32 %v93, %v890
    %v895 = vsel %vm107, %v893, 0.0
    %896 = vadd.xlane.f32.xlu0 %v895
    %v897 = vpop.xlane.xlu0 %896
    %v898 = vsel %vm107, %v894, 0.0
    %899 = vadd.xlane.f32.xlu0 %v898
    %v900 = vpop.xlane.xlu0 %899
    %v901 = vrcp.pop 32.0
    %v902 = vmul.f32 %v897, %v901
    %v903 = vmul.f32 %v900, %v901
    %v904 = vsub.f32 %v893, %v902
    %v905 = vsub.f32 %v894, %v903
    %v906 = vmul.f32 %v904, %v904
    %v907 = vmul.f32 %v905, %v905
    %v908 = vsel %vm107, %v906, 0.0
    %909 = vadd.xlane.f32.xlu0 %v908
    %v910 = vpop.xlane.xlu0 %909
    %v911 = vsel %vm107, %v907, 0.0
    %912 = vadd.xlane.f32.xlu0 %v911
    %v913 = vpop.xlane.xlu0 %912
    %v914 = vmul.f32 %v910, %v901
    %v915 = vmul.f32 %v913, %v901
    %v916 = vadd.f32 %v914, 1e-05
    %v917 = vadd.f32 %v915, 1e-05
    %v918 = vrsqrt.pop %v916
    %v919 = vrsqrt.pop %v917
    %v920 = vmul.f32 %v904, %v918
    %v921 = vmul.f32 %v905, %v919
    %v922 = vld [vmem:[#allocation7] sm:$0xff]
    %v923 = vld [vmem:[#allocation7 + $0x8] sm:$0xff]
    %v924 = vld [vmem:[#allocation7 + $0x10] sm:$0xff]
    %v925 = vld [vmem:[#allocation7 + $0x18] sm:$0xff]
    %v926 = vld [vmem:[%s9] sm:$0x1]
    %v928 = vlaneseq
    %v929 = vshrl.u32 %v928, 7
    %v930 = vsub.s32 0, %v929
    %v931 = vrot.slane %v926, %v930
    %v934 = vsel %vm107, %v920, 0
    %v937 = vsel %vm107, %v921, 0
    %939 = vmatprep.subr.mxu0 0.0
    %940 = vmatpush1.msra.mxu0 %v922
    %941 = vmatprep.subr.mxu0 0.0
    %942 = vmatpush1.msra.mxu0 %v923
    %943 = vmatprep.subr.mxu0 0.0
    %944 = vmatpush1.msra.mxu0 %v924
    %945 = vmatprep.subr.mxu0 0.0
    %946 = vmatpush1.msra.mxu0 %v925
    %947 = vmatprep.subr.mxu0 0.0
    %948 = vmatpush1.msra.mxu0 0.0
    %949 = vmatprep.subr.mxu0 0.0
    %950 = vmatpush1.msra.mxu0 0.0
    %951 = vmatprep.subr.mxu0 0.0
    %952 = vmatpush1.msra.mxu0 0.0
    %953 = vmatprep.subr.mxu0 0.0
    %954 = vmatpush1.msra.mxu0 0.0
    %955 = vmatprep.subr.mxu0 0.0
    %956 = vmatpush1.msra.mxu0 0.0
    %957 = vmatprep.subr.mxu0 0.0
    %958 = vmatpush1.msra.mxu0 0.0
    %959 = vmatprep.subr.mxu0 0.0
    %960 = vmatpush1.msra.mxu0 0.0
    %961 = vmatprep.subr.mxu0 0.0
    %962 = vmatpush1.msra.mxu0 0.0
    %963 = vmatprep.subr.mxu0 0.0
    %964 = vmatpush1.msra.mxu0 0.0
    %965 = vmatprep.subr.mxu0 0.0
    %966 = vmatpush1.msra.mxu0 0.0
    %967 = vmatprep.subr.mxu0 0.0
    %968 = vmatpush1.msra.mxu0 0.0
    %969 = vmatprep.subr.mxu0 0.0
    %970 = vmatpush1.msra.mxu0 0.0
    %971 = vmatprep.subr.mxu0 0.0
    %972 = vmatpush1.msra.mxu0 0.0
    %973 = vmatprep.subr.mxu0 0.0
    %974 = vmatpush1.msra.mxu0 0.0
    %975 = vmatprep.subr.mxu0 0.0
    %976 = vmatpush1.msra.mxu0 0.0
    %977 = vmatprep.subr.mxu0 0.0
    %978 = vmatpush1.msra.mxu0 0.0
    %979 = vmatprep.subr.mxu0 0.0
    %980 = vmatpush1.msra.mxu0 0.0
    %981 = vmatprep.subr.mxu0 0.0
    %982 = vmatpush1.msra.mxu0 0.0
    %983 = vmatprep.subr.mxu0 0.0
    %984 = vmatpush1.msra.mxu0 0.0
    %985 = vmatprep.subr.mxu0 0.0
    %986 = vmatpush1.msra.mxu0 0.0
    %987 = vmatprep.subr.mxu0 0.0
    %988 = vmatpush1.msra.mxu0 0.0
    %989 = vmatprep.subr.mxu0 0.0
    %990 = vmatpush1.msra.mxu0 0.0
    %991 = vmatprep.subr.mxu0 0.0
    %992 = vmatpush1.msra.mxu0 0.0
    %993 = vmatprep.subr.mxu0 0.0
    %994 = vmatpush1.msra.mxu0 0.0
    %995 = vmatprep.subr.mxu0 0.0
    %996 = vmatpush1.msra.mxu0 0.0
    %997 = vmatprep.subr.mxu0 0.0
    %998 = vmatpush1.msra.mxu0 0.0
    %999 = vmatprep.subr.mxu0 0.0
    %1000 = vmatpush1.msra.mxu0 0.0
    %1001 = vmatprep.subr.mxu0 0.0
    %1002 = vmatpush1.msra.mxu0 0.0
    %1003 = vmatprep.mubr.f32.mxu0 0.0
    %1004 = vmatmul.mubr.f32.gmra.mrb[0].mxu0 %v934
    %v1005 = vpop.f32.mrb[0].mxu0
    %v1006 = vadd.f32 %v931, %v1005
    %v1007 = vpop.f32.mrb[0].mxu0
    %1008 = vmatprep.mubr.f32.mxu0 0.0
    %1009 = vmatmul.mubr.f32.gmra.mrb[0].mxu0 %v937
    %v1010 = vpop.f32.mrb[0].mxu0
    %v1011 = vadd.f32 %v931, %v1010
    %v1012 = vpop.f32.mrb[0].mxu0
    %1013 = vdwg.mxu0
    %v1014 = vmax.f32 %v1006, 0.0
    %v1015 = vmax.f32 %v1011, 0.0
    %v1016 = vld [vmem:[%s6] sm:$0xff]
    %v1017 = vld [vmem:[%s6 + $0x8] sm:$0xff]
    %v1018 = vld [vmem:[%s6 + $0x10] sm:$0xff]
    %v1019 = vld [vmem:[%s6 + $0x18] sm:$0xff]
    %v1020 = vld [vmem:[%s6 + $0x20] sm:$0xff]
    %v1021 = vld [vmem:[%s6 + $0x28] sm:$0xff]
    %v1022 = vld [vmem:[%s6 + $0x30] sm:$0xff]
    %v1023 = vld [vmem:[%s6 + $0x38] sm:$0xff]
    %v1024 = vlaneseq
    %v1025 = vshrl.u32 %v1024, 7
    %v1026 = vsub.s32 0, %v1025
    %v1027 = vrot.slane %v98, %v1026
    %vm1028 = vcmask 523264
    %v1030 = vsel %vm1028, %v1014, 0
    %v1033 = vsel %vm1028, %v1015, 0
    %1035 = vmatprep.subr.mxu0 0.0
    %1036 = vmatpush1.msra.mxu0 %v1016
    %1037 = vmatprep.subr.mxu0 0.0
    %1038 = vmatpush1.msra.mxu0 %v1017
    %1039 = vmatprep.subr.mxu0 0.0
    %1040 = vmatpush1.msra.mxu0 %v1018
    %1041 = vmatprep.subr.mxu0 0.0
    %1042 = vmatpush1.msra.mxu0 %v1019
    %1043 = vmatprep.subr.mxu0 0.0
    %1044 = vmatpush1.msra.mxu0 %v1020
    %1045 = vmatprep.subr.mxu0 0.0
    %1046 = vmatpush1.msra.mxu0 %v1021
    %1047 = vmatprep.subr.mxu0 0.0
    %1048 = vmatpush1.msra.mxu0 %v1022
    %1049 = vmatprep.subr.mxu0 0.0
    %1050 = vmatpush1.msra.mxu0 %v1023
    %1051 = vmatprep.subr.mxu0 0.0
    %1052 = vmatpush1.msra.mxu0 0.0
    %1053 = vmatprep.subr.mxu0 0.0
    %1054 = vmatpush1.msra.mxu0 0.0
    %1055 = vmatprep.subr.mxu0 0.0
    %1056 = vmatpush1.msra.mxu0 0.0
    %1057 = vmatprep.subr.mxu0 0.0
    %1058 = vmatpush1.msra.mxu0 0.0
    %1059 = vmatprep.subr.mxu0 0.0
    %1060 = vmatpush1.msra.mxu0 0.0
    %1061 = vmatprep.subr.mxu0 0.0
    %1062 = vmatpush1.msra.mxu0 0.0
    %1063 = vmatprep.subr.mxu0 0.0
    %1064 = vmatpush1.msra.mxu0 0.0
    %1065 = vmatprep.subr.mxu0 0.0
    %1066 = vmatpush1.msra.mxu0 0.0
    %1067 = vmatprep.subr.mxu0 0.0
    %1068 = vmatpush1.msra.mxu0 0.0
    %1069 = vmatprep.subr.mxu0 0.0
    %1070 = vmatpush1.msra.mxu0 0.0
    %1071 = vmatprep.subr.mxu0 0.0
    %1072 = vmatpush1.msra.mxu0 0.0
    %1073 = vmatprep.subr.mxu0 0.0
    %1074 = vmatpush1.msra.mxu0 0.0
    %1075 = vmatprep.subr.mxu0 0.0
    %1076 = vmatpush1.msra.mxu0 0.0
    %1077 = vmatprep.subr.mxu0 0.0
    %1078 = vmatpush1.msra.mxu0 0.0
    %1079 = vmatprep.subr.mxu0 0.0
    %1080 = vmatpush1.msra.mxu0 0.0
    %1081 = vmatprep.subr.mxu0 0.0
    %1082 = vmatpush1.msra.mxu0 0.0
    %1083 = vmatprep.subr.mxu0 0.0
    %1084 = vmatpush1.msra.mxu0 0.0
    %1085 = vmatprep.subr.mxu0 0.0
    %1086 = vmatpush1.msra.mxu0 0.0
    %1087 = vmatprep.subr.mxu0 0.0
    %1088 = vmatpush1.msra.mxu0 0.0
    %1089 = vmatprep.subr.mxu0 0.0
    %1090 = vmatpush1.msra.mxu0 0.0
    %1091 = vmatprep.subr.mxu0 0.0
    %1092 = vmatpush1.msra.mxu0 0.0
    %1093 = vmatprep.subr.mxu0 0.0
    %1094 = vmatpush1.msra.mxu0 0.0
    %1095 = vmatprep.subr.mxu0 0.0
    %1096 = vmatpush1.msra.mxu0 0.0
    %1097 = vmatprep.subr.mxu0 0.0
    %1098 = vmatpush1.msra.mxu0 0.0
    %1099 = vmatprep.mubr.f32.mxu0 0.0
    %1100 = vmatmul.mubr.f32.gmra.mrb[0].mxu0 %v1030
    %v1101 = vpop.f32.mrb[0].mxu0
    %v1102 = vadd.f32 %v1027, %v1101
    %v1103 = vpop.f32.mrb[0].mxu0
    %1104 = vmatprep.mubr.f32.mxu0 0.0
    %1105 = vmatmul.mubr.f32.gmra.mrb[0].mxu0 %v1033
    %v1106 = vpop.f32.mrb[0].mxu0
    %v1107 = vadd.f32 %v1027, %v1106
    %v1108 = vpop.f32.mrb[0].mxu0
    %1109 = vdwg.mxu0
    %v1110 = vadd.f32 %v920, %v1102
    %v1111 = vadd.f32 %v921, %v1107
    %1112 = vst.msk [vmem:[#allocation10] sm:$0xff] %vm107, %v1110
    %1113 = vst.msk [vmem:[#allocation10 + $0x8] sm:$0xff] %vm107, %v1111
    // Predicated region
    $region62: #{tpu_custom_call.1} parent=1 // pred_check
      _
    $region63: #{tpu_custom_call.1} parent=1 // pred_check_branch
      %1115 = sbr.rel (0) target = $region65
    $region64: #{tpu_custom_call.1} parent=1 // pred_region
      %s1117 = ssub.s32 256, 256
      %1118 = vsyncadd [#allocation4], %s1117
      %s1119 = sshll.u32 [#allocation10], 4
      %s1120 = int_to_ptr.vmem [resolvable:$true] %s1119
      %1125 = dma.vmem_to_hbm [thread:$0]  %s1120, 256, %s11, [#allocation4], 128, 128, 8
    $region65: #{tpu_custom_call.1} parent=1 // pred_fallthru
      _
    // Predicated region
    $region66: #{tpu_custom_call.1} parent=1 // pred_check
      _
    $region67: #{tpu_custom_call.1} parent=1 // pred_check_branch
      %1127 = sbr.rel (0) target = $region69
    $region68: #{tpu_custom_call.1} parent=1 // pred_region
      %1128 = dma.done [#allocation4], 256
    $region69: #{tpu_custom_call.1} parent=1 // pred_fallthru
      _
    %1129 = vsyncpa [#allocation3], 1
    %1130 = vsyncpa [#allocation6], 1
    %1131 = vsyncpa [#allocation9], 1
    %1132 = vsyncpa [#allocation4], 1

</llo_original>
